<compile_context>
chip_gen: v5e
topology: v5e:2x2
jax: 0.10.0
libtpu: 0.0.40
codegen_flags: <defaults>
</compile_context>

<pallas_src>
import functools

import jax
import jax.numpy as jnp
from jax import lax
from jax.experimental import pallas as pl
from jax.experimental.pallas import tpu as pltpu

EPS = 1e-7
TOTAL_COUNT = 1e4            # Encoder.TOTAL_COUNT
BN_EPS = 1e-5                # torch.nn.BatchNorm1d default eps
GRID_SIZE = 5                # KANLinear defaults (efficient-kan)
SPLINE_ORDER = 3
N_BASIS = GRID_SIZE + SPLINE_ORDER              # 8
N_KNOTS = GRID_SIZE + 2 * SPLINE_ORDER + 1      # 12
KNOT_H = 2.0 / GRID_SIZE                        # uniform knot spacing
LANE = 128


# ---------------------------------------------------------------------------
# generation-aware sizing (v5e/v6e: 128 MiB VMEM; v7x: 64 MiB per TC)
# ---------------------------------------------------------------------------
def _vmem_capacity_bytes():
    try:
        info = pltpu.get_tpu_info()
        cap = getattr(info, "vmem_capacity_bytes", None)
        if cap:
            return int(cap)
    except Exception:
        pass
    return 64 * 1024 * 1024      # conservative fallback (v7x per-TC)


_VMEM_CAP = _vmem_capacity_bytes()
VMEM_LIMIT = min(_VMEM_CAP * 3 // 4, 100 * 1024 * 1024)
MAX_ROW_TILE = 512 if _VMEM_CAP >= (100 << 20) else 256


def _probe_single_buffer_mode():
    """pl.Buffered(1) (single-buffer grid-invariant weights) support varies
    across JAX versions; probe with a tiny kernel and fall back if missing."""
    try:
        mode = pl.Buffered(1)
        spec = pl.BlockSpec((8, 128), lambda i: (0, 0), pipeline_mode=mode)

        def _k(x_ref, o_ref):
            o_ref[...] = x_ref[...]

        out = pl.pallas_call(
            _k, grid=(1,), in_specs=[spec],
            out_specs=pl.BlockSpec((8, 128), lambda i: (0, 0)),
            out_shape=jax.ShapeDtypeStruct((8, 128), jnp.float32),
        )(jnp.zeros((8, 128), jnp.float32))
        jax.block_until_ready(out)
        return mode
    except Exception:
        return None


_SINGLE_BUF = _probe_single_buffer_mode()


# ---------------------------------------------------------------------------
# spec / tiling helpers
# ---------------------------------------------------------------------------
def _full_spec(shape):
    """Grid-invariant (weight) block: whole array, single-buffered if possible."""
    nd = len(shape)
    idx = lambda *args, _nd=nd: (0,) * _nd
    if _SINGLE_BUF is not None:
        return pl.BlockSpec(shape, idx, pipeline_mode=_SINGLE_BUF)
    return pl.BlockSpec(shape, idx)


def _row_spec(tile, cols):
    return pl.BlockSpec((tile, cols), lambda i: (i, 0))


def _compiler_params(semantics):
    return pltpu.CompilerParams(dimension_semantics=semantics,
                                vmem_limit_bytes=VMEM_LIMIT)


def _round_up(x, m):
    return ((x + m - 1) // m) * m


def _pad_lanes(a, mult=LANE):
    """Zero-pad the last dim to a multiple of 128 (lane-dense stores)."""
    pad = (-a.shape[-1]) % mult
    if pad:
        a = jnp.pad(a, [(0, 0)] * (a.ndim - 1) + [(0, pad)])
    return a


def _pick_row_tile(n, bytes_per_row):
    """Largest batch row tile fitting the per-generation VMEM budget."""
    budget = max(VMEM_LIMIT // 4, 1 << 20)     # leave room for weights + buffers
    t = int(budget // max(int(bytes_per_row), 1))
    t = min(t, MAX_ROW_TILE, n)
    if n <= 8:
        return max(n, 1)                       # single block == full array dim
    return max(8, (t // 8) * 8)


# ---------------------------------------------------------------------------
# in-kernel math helpers
# ---------------------------------------------------------------------------
def _softplus(x):
    return jnp.where(x > 0.0, x, 0.0) + jnp.log1p(jnp.exp(-jnp.abs(x)))


def _silu(x):
    # EUP exp + EUP approx reciprocal: keeps the saturated VALU slot free.
    return x * pl.reciprocal(1.0 + jnp.exp(-x), approx=True)


def _kan_matmul(ptr, w_ref):
    """KANLinear(ptr) as a single fused MXU matmul.

    Knots and Cox–de-Boor denominators are static scalars (default uniform
    grid on [-1, 1] extended by spline_order knots of spacing h = 2/grid_size;
    knots[j+k] - knots[j] == k*h), so the basis recursion is subtract +
    scalar-multiply only.  The 9 branch operands (silu base + 8 bases) are
    concatenated along lanes and contracted against the pre-concatenated
    weight in one K = 9*F matmul.
    """
    knots = [(j - SPLINE_ORDER) * KNOT_H - 1.0 for j in range(N_KNOTS)]
    bases = [((ptr >= knots[j]) & (ptr < knots[j + 1])).astype(jnp.float32)
             for j in range(N_KNOTS - 1)]
    for k in range(1, SPLINE_ORDER + 1):
        inv = 1.0 / (k * KNOT_H)
        nxt = []
        for j in range(len(bases) - 1):
            left = (ptr - knots[j]) * inv
            right = (knots[j + k + 1] - ptr) * inv
            nxt.append(left * bases[j] + right * bases[j + 1])
        bases = nxt
    operand = jnp.concatenate([_silu(ptr)] + bases, axis=1).astype(jnp.bfloat16)
    return jnp.dot(operand, w_ref[...], preferred_element_type=jnp.float32)


def _write_stats(stats_ref, y, n_rows, tile):
    """Per-tile sum / sum-of-squares (rows past n_rows masked out)."""
    row0 = pl.program_id(0) * tile
    rid = lax.broadcasted_iota(jnp.int32, y.shape, 0) + row0
    ym = jnp.where(rid < n_rows, y, 0.0)
    s1 = jnp.sum(ym, axis=0, keepdims=True)
    s2 = jnp.sum(ym * ym, axis=0, keepdims=True)
    stats_ref[...] = jnp.concatenate([s1, s2], axis=0)[None]


# ---------------------------------------------------------------------------
# encoder kernels (row-tiled; BN stats reduced outside, affine folded forward)
# ---------------------------------------------------------------------------
def encoder_layer0_kernel(x_ref, w_ref, y_ref, stats_ref, l_ref, *, n_rows, tile):
    x = x_ref[...]
    # l = sum(x, dim=1): matches PyTorch compute_l (no epsilon; an all-zero
    # row yields inf/NaN exactly like the reference).
    l = jnp.sum(x, axis=1, keepdims=True)
    l_ref[...] = l
    ptr = jnp.log1p(x * (TOTAL_COUNT * pl.reciprocal(l, approx=True)))
    y = _kan_matmul(ptr, w_ref)
    y_ref[...] = y
    _write_stats(stats_ref, y, n_rows, tile)


def encoder_layer_kernel(y_prev_ref, a_ref, c_ref, w_ref, y_ref, stats_ref, *,
                         n_rows, tile):
    ptr = y_prev_ref[...] * a_ref[...] + c_ref[...]      # BN-apply (prev layer)
    y = _kan_matmul(ptr, w_ref)
    y_ref[...] = y
    _write_stats(stats_ref, y, n_rows, tile)


def encoder_head_kernel(y_prev_ref, a_ref, c_ref, hw_ref, hb_ref, head_ref, *,
                        z_dim):
    ptr = y_prev_ref[...] * a_ref[...] + c_ref[...]      # BN-apply (last layer)
    y = jnp.dot(ptr.astype(jnp.bfloat16), hw_ref[...],
                preferred_element_type=jnp.float32) + hb_ref[...]
    col = lax.broadcasted_iota(jnp.int32, y.shape, 1)
    is_std = (col >= z_dim) & (col < 2 * z_dim)
    head_ref[...] = jnp.where(is_std, _softplus(y) + EPS, y)


# ---------------------------------------------------------------------------
# decoder kernel (row-tiled, lane-padded output): NegativeBinomial logits
# ---------------------------------------------------------------------------
def decoder_kernel(u_ref, b_ref, l_ref, v_t_ref, table_ref, logits_ref, *,
                   f_pad, f_out, n_batches):
    u = u_ref[...]
    b = b_ref[...]                                        # (rows, 1) int32
    # one reused one-hot select over the combined [softplus(scale)|bias|log_theta]
    # table (exact gather, n_batches is small & static)
    g = jnp.zeros((u.shape[0], 3 * f_pad), jnp.float32)
    for j in range(n_batches):
        sel = (b == j).astype(jnp.float32)
        g = g + sel * table_ref[j:j + 1, :]
    scale = g[:, :f_pad]
    bias = g[:, f_pad:2 * f_pad]
    log_theta = g[:, 2 * f_pad:]
    logit_mu = scale * jnp.dot(u.astype(jnp.bfloat16), v_t_ref[...],
                               preferred_element_type=jnp.float32) + bias
    col = lax.broadcasted_iota(jnp.int32, logit_mu.shape, 1)
    valid = col < f_out                                   # exclude lane padding
    m = jnp.max(jnp.where(valid, logit_mu, -jnp.inf), axis=1, keepdims=True)
    e = jnp.where(valid, jnp.exp(logit_mu - m), 0.0)
    inv = pl.reciprocal(jnp.sum(e, axis=1, keepdims=True), approx=True)
    mu = e * inv * l_ref[...]
    logits_ref[...] = jnp.log(mu + EPS) - log_theta


# ---------------------------------------------------------------------------
# discriminator kernel (row-tiled): one-hot(b) folded in as a bias-row gather
# ---------------------------------------------------------------------------
def discriminator_kernel(u_ref, b_ref, w0u_ref, w0b_ref, b0_ref, w1_ref, b1_ref,
                         wp_ref, bp_ref, out_ref, *, n_batches):
    u = u_ref[...]
    b = b_ref[...]
    hb = jnp.zeros((u.shape[0], w0b_ref.shape[1]), jnp.float32)
    for j in range(n_batches):
        hb = hb + (b == j).astype(jnp.float32) * w0b_ref[j:j + 1, :]
    h = jnp.dot(u.astype(jnp.bfloat16), w0u_ref[...],
                preferred_element_type=jnp.float32) + hb + b0_ref[...]
    h = jnp.maximum(h, 0.2 * h)                           # LeakyReLU(0.2)
    # TODO(synk): Dropout layers are identity here (eval semantics); training-mode RNG dropout omitted.
    h = jnp.dot(h.astype(jnp.bfloat16), w1_ref[...],
                preferred_element_type=jnp.float32) + b1_ref[...]
    h = jnp.maximum(h, 0.2 * h)
    out_ref[...] = jnp.dot(h.astype(jnp.bfloat16), wp_ref[...],
                           preferred_element_type=jnp.float32) + bp_ref[...]


# ---------------------------------------------------------------------------
# parameter construction (shapes follow the module __init__)
# ---------------------------------------------------------------------------
def _rand(key, shape, scale=0.1):
    return scale * jax.random.normal(key, shape, dtype=jnp.float32)


def init_encoder_params(key, in_features, z_dim, h_dim, h_depth=2):
    params = {"layers": []}
    dims_in = in_features
    for _ in range(h_depth):
        key, k1, k2, k3, k4, k5 = jax.random.split(key, 6)
        params["layers"].append({
            "base_w": _rand(k1, (h_dim, dims_in)),
            "spline_w": _rand(k2, (h_dim, dims_in, N_BASIS), 0.05),
            "spline_scaler": 1.0 + _rand(k3, (h_dim, dims_in)),
            "bn_gamma": 1.0 + _rand(k4, (1, h_dim), 0.05),
            "bn_beta": _rand(k5, (1, h_dim), 0.05),
        })
        dims_in = h_dim
    key, k1, k2, k3, k4 = jax.random.split(key, 5)
    params["loc_w"] = _rand(k1, (z_dim, h_dim))
    params["loc_b"] = _rand(k2, (1, z_dim), 0.05)
    params["std_w"] = _rand(k3, (z_dim, h_dim))
    params["std_b"] = _rand(k4, (1, z_dim), 0.05)
    return params


def init_decoder_params(key, out_features, z_dim, n_batches):
    k1, k2, k3, k4 = jax.random.split(key, 4)
    return {
        "v": _rand(k1, (out_features, z_dim)),
        "scale_lin": _rand(k2, (n_batches, out_features)),
        "bias": _rand(k3, (n_batches, out_features), 0.05),
        "log_theta": _rand(k4, (n_batches, out_features)),
    }


def init_discriminator_params(key, in_features, out_features, n_batches, h_dim):
    d_in = in_features + n_batches
    k0, k1, k2, k3, k4, k5 = jax.random.split(key, 6)
    return {
        "w0": _rand(k0, (h_dim, d_in)), "b0": _rand(k1, (1, h_dim), 0.05),
        "w1": _rand(k2, (h_dim, h_dim)), "b1": _rand(k3, (1, h_dim), 0.05),
        "wp": _rand(k4, (out_features, h_dim)), "bp": _rand(k5, (1, out_features), 0.05),
        "in_features": in_features, "n_batches": n_batches,
    }


def init_classifier_params(key, in_features, out_features):
    k0, k1 = jax.random.split(key)
    return {"w": _rand(k0, (out_features, in_features)),
            "b": _rand(k1, (1, out_features), 0.05)}


# ---------------------------------------------------------------------------
# one-time weight preparation (hoisted out of the forward path)
# ---------------------------------------------------------------------------
def prepare_encoder(params, classifier=None):
    layers = []
    for p in params["layers"]:
        sw = p["spline_w"] * p["spline_scaler"][:, :, None]          # (H, Fin, 8)
        blocks = [p["base_w"].T] + [sw[:, :, k].T for k in range(N_BASIS)]
        layers.append({
            "w": jnp.concatenate(blocks, axis=0).astype(jnp.bfloat16),  # (9*Fin, H)
            "gamma": p["bn_gamma"], "beta": p["bn_beta"],
        })
    z = params["loc_w"].shape[0]
    head_w = [params["loc_w"], params["std_w"]]
    head_b = [params["loc_b"], params["std_b"]]
    n_cls = 0
    if classifier is not None:
        # Fold the linear Classifier into the head matmul's spare padded lanes.
        # TODO(synk): valid because the latent fed to the classifier is the
        # Normal mean (u == loc, no rsample) in this forward path.
        head_w.append(classifier["w"] @ params["loc_w"])                      # (C, H)
        head_b.append(params["loc_b"] @ classifier["w"].T + classifier["b"])  # (1, C)
        n_cls = classifier["w"].shape[0]
    hw = jnp.concatenate(head_w, axis=0)       # (2Z + C, H)
    hb = jnp.concatenate(head_b, axis=1)       # (1, 2Z + C)
    return {
        "layers": layers,
        "head_w_t": _pad_lanes(hw.T).astype(jnp.bfloat16),   # (H, pad128)
        "head_b": _pad_lanes(hb),                            # (1, pad128)
        "z_dim": z, "n_cls": n_cls,
        "in_features": params["layers"][0]["base_w"].shape[1],
        "h_dim": params["layers"][0]["base_w"].shape[0],
    }


def prepare_decoder(params):
    f = params["v"].shape[0]
    f_pad = _round_up(f, LANE)
    table = jnp.concatenate([_pad_lanes(jax.nn.softplus(params["scale_lin"])),
                             _pad_lanes(params["bias"]),
                             _pad_lanes(params["log_theta"])], axis=1)
    return {
        "v_t": _pad_lanes(params["v"].T).astype(jnp.bfloat16),   # (Z, f_pad)
        "table": table,                                          # (nb, 3*f_pad)
        # total_count = exp(log_theta) is u-independent: compute once on the
        # tiny (n_batches, F) table.
        "total_table": jnp.exp(params["log_theta"]),
        "f_out": f, "f_pad": f_pad,
        "n_batches": params["scale_lin"].shape[0],
    }


def prepare_discriminator(params):
    z = params["in_features"]
    return {
        "w0u_t": params["w0"][:, :z].T.astype(jnp.bfloat16),     # (Z, H)
        "w0b_t": params["w0"][:, z:].T,                          # (NB, H) f32
        "b0": params["b0"],
        "w1_t": params["w1"].T.astype(jnp.bfloat16),
        "b1": params["b1"],
        "wp_t": _pad_lanes(params["wp"].T).astype(jnp.bfloat16),
        "bp": _pad_lanes(params["bp"]),
        "out_features": params["wp"].shape[0],
        "n_batches": params["n_batches"],
    }


# ---------------------------------------------------------------------------
# module forwards (thin glue around the Pallas kernels)
# ---------------------------------------------------------------------------
def _bn_scale_shift(stats, n_rows, layer):
    """Reduce per-tile partials -> training-mode BN affine (y*a + c)."""
    s = jnp.sum(stats, axis=0)                         # (2, H)
    mean = s[0] / n_rows
    var = s[1] / n_rows - mean * mean                  # biased variance
    a = layer["gamma"] * lax.rsqrt(var + BN_EPS)       # (1, H)
    c = layer["beta"] - mean * a                       # (1, H)
    return a, c


def encoder_forward(prep, x):
    n, f = x.shape
    h = prep["h_dim"]
    z = prep["z_dim"]
    p_out = prep["head_w_t"].shape[1]
    n_layers = len(prep["layers"])

    # ---- layer 0: normalize + KAN; emits pre-BN y0, per-tile stats, l ----
    # TODO(synk): the feature axis is not chunked; very large F would need a
    # K-accumulating grid axis plus a separate l pre-pass.
    w0 = prep["layers"][0]["w"]
    tile = _pick_row_tile(n, 4 * (24 * f + 4 * h) + 64)
    n_tiles = pl.cdiv(n, tile)
    y, stats, l = pl.pallas_call(
        functools.partial(encoder_layer0_kernel, n_rows=n, tile=tile),
        grid=(n_tiles,),
        in_specs=[_row_spec(tile, f), _full_spec(w0.shape)],
        out_specs=(_row_spec(tile, h),
                   pl.BlockSpec((1, 2, h), lambda i: (i, 0, 0)),
                   _row_spec(tile, 1)),
        out_shape=(jax.ShapeDtypeStruct((n, h), jnp.float32),
                   jax.ShapeDtypeStruct((n_tiles, 2, h), jnp.float32),
                   jax.ShapeDtypeStruct((n, 1), jnp.float32)),
        compiler_params=_compiler_params(("parallel",)),
    )(x, w0)
    a, c = _bn_scale_shift(stats, n, prep["layers"][0])

    # ---- middle layers: BN-apply(prev) + KAN ----
    for li in range(1, n_layers):
        w = prep["layers"][li]["w"]
        tile = _pick_row_tile(n, 4 * (24 * h + 4 * h) + 64)
        n_tiles = pl.cdiv(n, tile)
        y, stats = pl.pallas_call(
            functools.partial(encoder_layer_kernel, n_rows=n, tile=tile),
            grid=(n_tiles,),
            in_specs=[_row_spec(tile, h), _full_spec((1, h)), _full_spec((1, h)),
                      _full_spec(w.shape)],
            out_specs=(_row_spec(tile, h),
                       pl.BlockSpec((1, 2, h), lambda i: (i, 0, 0))),
            out_shape=(jax.ShapeDtypeStruct((n, h), jnp.float32),
                       jax.ShapeDtypeStruct((n_tiles, 2, h), jnp.float32)),
            compiler_params=_compiler_params(("parallel",)),
        )(y, a, c, w)
        a, c = _bn_scale_shift(stats, n, prep["layers"][li])

    # ---- heads: BN-apply(last) + fused loc/std(/classifier) matmul ----
    # TODO(synk): BN uses current-batch statistics only (running stats never
    # updated), matching the training-mode normalization path.
    tile = _pick_row_tile(n, 4 * (2 * h + 2 * p_out) + 64)
    head = pl.pallas_call(
        functools.partial(encoder_head_kernel, z_dim=z),
        grid=(pl.cdiv(n, tile),),
        in_specs=[_row_spec(tile, h), _full_spec((1, h)), _full_spec((1, h)),
                  _full_spec(prep["head_w_t"].shape),
                  _full_spec(prep["head_b"].shape)],
        out_specs=_row_spec(tile, p_out),
        out_shape=jax.ShapeDtypeStruct((n, p_out), jnp.float32),
        compiler_params=_compiler_params(("parallel",)),
    )(y, a, c, prep["head_w_t"], prep["head_b"])

    loc = head[:, :z]
    std = head[:, z:2 * z]
    cls = head[:, 2 * z:2 * z + prep["n_cls"]] if prep["n_cls"] else None
    return loc, std, l, cls


def decoder_forward(prep, u, b, l):
    n, zdim = u.shape
    f_pad, f_out = prep["f_pad"], prep["f_out"]
    b2 = b.reshape(n, 1).astype(jnp.int32)
    tile = _pick_row_tile(n, 4 * (8 * f_pad + zdim) + 64)
    logits = pl.pallas_call(
        functools.partial(decoder_kernel, f_pad=f_pad, f_out=f_out,
                          n_batches=prep["n_batches"]),
        grid=(pl.cdiv(n, tile),),
        in_specs=[_row_spec(tile, zdim), _row_spec(tile, 1), _row_spec(tile, 1),
                  _full_spec(prep["v_t"].shape), _full_spec(prep["table"].shape)],
        out_specs=_row_spec(tile, f_pad),
        out_shape=jax.ShapeDtypeStruct((n, f_pad), jnp.float32),
        compiler_params=_compiler_params(("parallel",)),
    )(u, b2, l, prep["v_t"], prep["table"])
    total = prep["total_table"][b]            # (N, F) via tiny-table gather
    return total, logits[:, :f_out]


def discriminator_forward(prep, u, b):
    n, zdim = u.shape
    b2 = b.reshape(n, 1).astype(jnp.int32)
    p_out = prep["wp_t"].shape[1]
    h = prep["b0"].shape[1]
    tile = _pick_row_tile(n, 4 * (zdim + 4 * h + 2 * p_out) + 64)
    out = pl.pallas_call(
        functools.partial(discriminator_kernel, n_batches=prep["n_batches"]),
        grid=(pl.cdiv(n, tile),),
        in_specs=[_row_spec(tile, zdim), _row_spec(tile, 1),
                  _full_spec(prep["w0u_t"].shape), _full_spec(prep["w0b_t"].shape),
                  _full_spec(prep["b0"].shape), _full_spec(prep["w1_t"].shape),
                  _full_spec(prep["b1"].shape), _full_spec(prep["wp_t"].shape),
                  _full_spec(prep["bp"].shape)],
        out_specs=_row_spec(tile, p_out),
        out_shape=jax.ShapeDtypeStruct((n, p_out), jnp.float32),
        compiler_params=_compiler_params(("parallel",)),
    )(u, b2, prep["w0u_t"], prep["w0b_t"], prep["b0"], prep["w1_t"],
      prep["b1"], prep["wp_t"], prep["bp"])
    return out[:, :prep["out_features"]]


# ---------------------------------------------------------------------------
if __name__ == "__main__":
    N, Z, H, N_BATCHES = 8, 16, 32, 2
    FEAT = {"rna": 32, "atac": 48}
    N_CLASSES = 4

    root = jax.random.PRNGKey(0)
    k_data, k_enc, k_dec, k_du, k_cls = jax.random.split(root, 5)

    # count-like inputs per modality (Encoder uses the raw-count path: xrep empty)
    data = {}
    for i, (name, f) in enumerate(FEAT.items()):
        data[name] = jax.random.poisson(
            jax.random.fold_in(k_data, i), 2.0, (N, f)).astype(jnp.float32)
    b = (jnp.arange(N) % N_BATCHES).astype(jnp.int32)

    cls_params = init_classifier_params(k_cls, Z, N_CLASSES)
    x2u = {}
    for i, (name, f) in enumerate(FEAT.items()):
        enc_params = init_encoder_params(jax.random.fold_in(k_enc, i), f, Z, H)
        # classifier applies to the "rna" latent in this demo -> fold it there
        x2u[name] = prepare_encoder(enc_params,
                                    classifier=cls_params if name == "rna" else None)
    u2x = {name: prepare_decoder(
               init_decoder_params(jax.random.fold_in(k_dec, i), f, Z, N_BATCHES))
           for i, (name, f) in enumerate(FEAT.items())}
    du = prepare_discriminator(
        init_discriminator_params(k_du, Z, len(FEAT), N_BATCHES, H))
    prior = (jnp.float32(0.0), jnp.float32(1.0))   # Prior(): D.Normal(loc=0, std=1)

    outputs = {}
    cls_logits = None
    u_all, b_all = [], []
    for name in FEAT:
        loc, std, l, cls = encoder_forward(x2u[name], data[name])  # D.Normal, l
        # TODO(synk): use the Normal mean as the latent sample (no rsample / RNG reparameterization).
        u = loc
        total, logits = decoder_forward(u2x[name], u, b, l)        # D.NegativeBinomial params
        outputs[name] = (loc, std, l, total, logits)
        if cls is not None:
            cls_logits = cls
        u_all.append(u)
        b_all.append(b)

    u_cat = jnp.concatenate(u_all, axis=0)
    b_cat = jnp.concatenate(b_all, axis=0)
    du_logits = discriminator_forward(du, u_cat, b_cat)

    for vals in outputs.values():
        for v in vals:
            jax.block_until_ready(v)
    jax.block_until_ready(du_logits)
    jax.block_until_ready(cls_logits)
    jax.block_until_ready(prior)

    print("KERNEL_OK")
</pallas_src>

<mosaic_0001>
module attributes {stable_mosaic.version = 11 : i64} {
  func.func @_k(%arg0: i32, %arg1: memref<8x128xf32, #tpu.memory_space<vmem>>, %arg2: memref<8x128xf32, #tpu.memory_space<vmem>>) attributes {dimension_semantics = [#tpu.dimension_semantics<arbitrary>], iteration_bounds = array<i64: 1>, scalar_prefetch = 0 : i64, scratch_operands = 0 : i64, tpu.core_type = #tpu.core_type<tc>, window_params = [{pipeline_mode = #tpu.pipeline_mode<synchronous>, transform_indices = @transform_0, window_bounds = array<i64: 8, 128>}, {pipeline_mode = #tpu.pipeline_mode<synchronous>, transform_indices = @transform_1, window_bounds = array<i64: 8, 128>}]} {
    %c0 = arith.constant 0 : index
    %c0_0 = arith.constant 0 : index
    %0 = vector.load %arg1[%c0, %c0_0] : memref<8x128xf32, #tpu.memory_space<vmem>>, vector<8x128xf32>
    %c0_1 = arith.constant 0 : index
    %c0_2 = arith.constant 0 : index
    %1 = vector.load %arg2[%c0_1, %c0_2] : memref<8x128xf32, #tpu.memory_space<vmem>>, vector<8x128xf32>
    tpu.vector_store %arg2[%c0_1, %c0_2], %0 {strides = array<i32>} : memref<8x128xf32, #tpu.memory_space<vmem>>, vector<8x128xf32>,
    return
  }
  func.func @transform_0(%arg0: i32) -> (i32, i32) {
    %c0_i32 = arith.constant 0 : i32
    %c0_i32_0 = arith.constant 0 : i32
    %c0_i32_1 = arith.constant 0 : i32
    return %c0_i32, %c0_i32_0 : i32, i32
  }
  func.func @transform_1(%arg0: i32) -> (i32, i32) {
    %c0_i32 = arith.constant 0 : i32
    %c0_i32_0 = arith.constant 0 : i32
    %c0_i32_1 = arith.constant 0 : i32
    return %c0_i32, %c0_i32_0 : i32, i32
  }
}

module attributes {stable_mosaic.version = 11 : i64} {
  func.func @encoder_layer0_kernel(%arg0: i32, %arg1: memref<8x32xf32, #tpu.memory_space<vmem>>, %arg2: memref<288x32xbf16, #tpu.memory_space<vmem>>, %arg3: memref<8x32xf32, #tpu.memory_space<vmem>>, %arg4: memref<1x2x32xf32, #tpu.memory_space<vmem>>, %arg5: memref<8x1xf32, #tpu.memory_space<vmem>>) attributes {dimension_semantics = [#tpu.dimension_semantics<parallel>], iteration_bounds = array<i64: 1>, scalar_prefetch = 0 : i64, scratch_operands = 0 : i64, tpu.core_type = #tpu.core_type<tc>, window_params = [{transform_indices = @transform_0, window_bounds = array<i64: 8, 32>}, {pipeline_mode = #tpu.pipeline_mode<synchronous>, transform_indices = @transform_1, window_bounds = array<i64: 288, 32>}, {transform_indices = @transform_2, window_bounds = array<i64: 8, 32>}, {transform_indices = @transform_3, window_bounds = array<i64: 1, 2, 32>}, {transform_indices = @transform_4, window_bounds = array<i64: 8, 1>}]} {
    %c0 = arith.constant 0 : index
    %c0_0 = arith.constant 0 : index
    %0 = vector.load %arg1[%c0, %c0_0] : memref<8x32xf32, #tpu.memory_space<vmem>>, vector<8x32xf32>
    %cst = arith.constant dense<0.000000e+00> : vector<8xf32>
    %1 = vector.multi_reduction <add>, %0, %cst [1] : vector<8x32xf32> to vector<8xf32>
    %2 = vector.shape_cast %1 : vector<8xf32> to vector<8x1xf32>
    %c0_1 = arith.constant 0 : index
    %c0_2 = arith.constant 0 : index
    %3 = vector.load %arg5[%c0_1, %c0_2] : memref<8x1xf32, #tpu.memory_space<vmem>>, vector<8x1xf32>
    tpu.vector_store %arg5[%c0_1, %c0_2], %2 {strides = array<i32>} : memref<8x1xf32, #tpu.memory_space<vmem>>, vector<8x1xf32>,
    %4 = tpu.reciprocal %2 {approx = true} : vector<8x1xf32> -> vector<8x1xf32>
    %cst_3 = arith.constant 1.000000e+04 : f32
    %5 = vector.broadcast %cst_3 : f32 to vector<8x1xf32>
    %6 = arith.mulf %5, %4 : vector<8x1xf32>
    %7 = vector.broadcast %6 : vector<8x1xf32> to vector<8x32xf32>
    %8 = arith.mulf %0, %7 : vector<8x32xf32>
    %9 = math.log1p %8 : vector<8x32xf32>
    %cst_4 = arith.constant -2.200000e+00 : f32
    %10 = vector.broadcast %cst_4 : f32 to vector<8x32xf32>
    %11 = arith.cmpf oge, %9, %10 : vector<8x32xf32>
    %cst_5 = arith.constant -1.800000e+00 : f32
    %12 = vector.broadcast %cst_5 : f32 to vector<8x32xf32>
    %13 = arith.cmpf olt, %9, %12 : vector<8x32xf32>
    %14 = arith.andi %11, %13 : vector<8x32xi1>
    %15 = arith.extui %14 : vector<8x32xi1> to vector<8x32xi32>
    %16 = arith.sitofp %15 : vector<8x32xi32> to vector<8x32xf32>
    %cst_6 = arith.constant -1.800000e+00 : f32
    %17 = vector.broadcast %cst_6 : f32 to vector<8x32xf32>
    %18 = arith.cmpf oge, %9, %17 : vector<8x32xf32>
    %cst_7 = arith.constant -1.400000e+00 : f32
    %19 = vector.broadcast %cst_7 : f32 to vector<8x32xf32>
    %20 = arith.cmpf olt, %9, %19 : vector<8x32xf32>
    %21 = arith.andi %18, %20 : vector<8x32xi1>
    %22 = arith.extui %21 : vector<8x32xi1> to vector<8x32xi32>
    %23 = arith.sitofp %22 : vector<8x32xi32> to vector<8x32xf32>
    %cst_8 = arith.constant -1.400000e+00 : f32
    %24 = vector.broadcast %cst_8 : f32 to vector<8x32xf32>
    %25 = arith.cmpf oge, %9, %24 : vector<8x32xf32>
    %cst_9 = arith.constant -1.000000e+00 : f32
    %26 = vector.broadcast %cst_9 : f32 to vector<8x32xf32>
    %27 = arith.cmpf olt, %9, %26 : vector<8x32xf32>
    %28 = arith.andi %25, %27 : vector<8x32xi1>
    %29 = arith.extui %28 : vector<8x32xi1> to vector<8x32xi32>
    %30 = arith.sitofp %29 : vector<8x32xi32> to vector<8x32xf32>
    %cst_10 = arith.constant -1.000000e+00 : f32
    %31 = vector.broadcast %cst_10 : f32 to vector<8x32xf32>
    %32 = arith.cmpf oge, %9, %31 : vector<8x32xf32>
    %cst_11 = arith.constant -6.000000e-01 : f32
    %33 = vector.broadcast %cst_11 : f32 to vector<8x32xf32>
    %34 = arith.cmpf olt, %9, %33 : vector<8x32xf32>
    %35 = arith.andi %32, %34 : vector<8x32xi1>
    %36 = arith.extui %35 : vector<8x32xi1> to vector<8x32xi32>
    %37 = arith.sitofp %36 : vector<8x32xi32> to vector<8x32xf32>
    %cst_12 = arith.constant -6.000000e-01 : f32
    %38 = vector.broadcast %cst_12 : f32 to vector<8x32xf32>
    %39 = arith.cmpf oge, %9, %38 : vector<8x32xf32>
    %cst_13 = arith.constant -2.000000e-01 : f32
    %40 = vector.broadcast %cst_13 : f32 to vector<8x32xf32>
    %41 = arith.cmpf olt, %9, %40 : vector<8x32xf32>
    %42 = arith.andi %39, %41 : vector<8x32xi1>
    %43 = arith.extui %42 : vector<8x32xi1> to vector<8x32xi32>
    %44 = arith.sitofp %43 : vector<8x32xi32> to vector<8x32xf32>
    %cst_14 = arith.constant -2.000000e-01 : f32
    %45 = vector.broadcast %cst_14 : f32 to vector<8x32xf32>
    %46 = arith.cmpf oge, %9, %45 : vector<8x32xf32>
    %cst_15 = arith.constant 2.000000e-01 : f32
    %47 = vector.broadcast %cst_15 : f32 to vector<8x32xf32>
    %48 = arith.cmpf olt, %9, %47 : vector<8x32xf32>
    %49 = arith.andi %46, %48 : vector<8x32xi1>
    %50 = arith.extui %49 : vector<8x32xi1> to vector<8x32xi32>
    %51 = arith.sitofp %50 : vector<8x32xi32> to vector<8x32xf32>
    %cst_16 = arith.constant 2.000000e-01 : f32
    %52 = vector.broadcast %cst_16 : f32 to vector<8x32xf32>
    %53 = arith.cmpf oge, %9, %52 : vector<8x32xf32>
    %cst_17 = arith.constant 6.000000e-01 : f32
    %54 = vector.broadcast %cst_17 : f32 to vector<8x32xf32>
    %55 = arith.cmpf olt, %9, %54 : vector<8x32xf32>
    %56 = arith.andi %53, %55 : vector<8x32xi1>
    %57 = arith.extui %56 : vector<8x32xi1> to vector<8x32xi32>
    %58 = arith.sitofp %57 : vector<8x32xi32> to vector<8x32xf32>
    %cst_18 = arith.constant 6.000000e-01 : f32
    %59 = vector.broadcast %cst_18 : f32 to vector<8x32xf32>
    %60 = arith.cmpf oge, %9, %59 : vector<8x32xf32>
    %cst_19 = arith.constant 1.000000e+00 : f32
    %61 = vector.broadcast %cst_19 : f32 to vector<8x32xf32>
    %62 = arith.cmpf olt, %9, %61 : vector<8x32xf32>
    %63 = arith.andi %60, %62 : vector<8x32xi1>
    %64 = arith.extui %63 : vector<8x32xi1> to vector<8x32xi32>
    %65 = arith.sitofp %64 : vector<8x32xi32> to vector<8x32xf32>
    %cst_20 = arith.constant 1.000000e+00 : f32
    %66 = vector.broadcast %cst_20 : f32 to vector<8x32xf32>
    %67 = arith.cmpf oge, %9, %66 : vector<8x32xf32>
    %cst_21 = arith.constant 1.400000e+00 : f32
    %68 = vector.broadcast %cst_21 : f32 to vector<8x32xf32>
    %69 = arith.cmpf olt, %9, %68 : vector<8x32xf32>
    %70 = arith.andi %67, %69 : vector<8x32xi1>
    %71 = arith.extui %70 : vector<8x32xi1> to vector<8x32xi32>
    %72 = arith.sitofp %71 : vector<8x32xi32> to vector<8x32xf32>
    %cst_22 = arith.constant 1.400000e+00 : f32
    %73 = vector.broadcast %cst_22 : f32 to vector<8x32xf32>
    %74 = arith.cmpf oge, %9, %73 : vector<8x32xf32>
    %cst_23 = arith.constant 1.800000e+00 : f32
    %75 = vector.broadcast %cst_23 : f32 to vector<8x32xf32>
    %76 = arith.cmpf olt, %9, %75 : vector<8x32xf32>
    %77 = arith.andi %74, %76 : vector<8x32xi1>
    %78 = arith.extui %77 : vector<8x32xi1> to vector<8x32xi32>
    %79 = arith.sitofp %78 : vector<8x32xi32> to vector<8x32xf32>
    %cst_24 = arith.constant 1.800000e+00 : f32
    %80 = vector.broadcast %cst_24 : f32 to vector<8x32xf32>
    %81 = arith.cmpf oge, %9, %80 : vector<8x32xf32>
    %cst_25 = arith.constant 2.200000e+00 : f32
    %82 = vector.broadcast %cst_25 : f32 to vector<8x32xf32>
    %83 = arith.cmpf olt, %9, %82 : vector<8x32xf32>
    %84 = arith.andi %81, %83 : vector<8x32xi1>
    %85 = arith.extui %84 : vector<8x32xi1> to vector<8x32xi32>
    %86 = arith.sitofp %85 : vector<8x32xi32> to vector<8x32xf32>
    %cst_26 = arith.constant -2.200000e+00 : f32
    %87 = vector.broadcast %cst_26 : f32 to vector<8x32xf32>
    %88 = arith.subf %9, %87 : vector<8x32xf32>
    %cst_27 = arith.constant 2.500000e+00 : f32
    %89 = vector.broadcast %cst_27 : f32 to vector<8x32xf32>
    %90 = arith.mulf %88, %89 : vector<8x32xf32>
    %cst_28 = arith.constant -1.400000e+00 : f32
    %91 = vector.broadcast %cst_28 : f32 to vector<8x32xf32>
    %92 = arith.subf %91, %9 : vector<8x32xf32>
    %cst_29 = arith.constant 2.500000e+00 : f32
    %93 = vector.broadcast %cst_29 : f32 to vector<8x32xf32>
    %94 = arith.mulf %92, %93 : vector<8x32xf32>
    %95 = arith.mulf %90, %16 : vector<8x32xf32>
    %96 = arith.mulf %94, %23 : vector<8x32xf32>
    %97 = arith.addf %95, %96 : vector<8x32xf32>
    %cst_30 = arith.constant -1.800000e+00 : f32
    %98 = vector.broadcast %cst_30 : f32 to vector<8x32xf32>
    %99 = arith.subf %9, %98 : vector<8x32xf32>
    %cst_31 = arith.constant 2.500000e+00 : f32
    %100 = vector.broadcast %cst_31 : f32 to vector<8x32xf32>
    %101 = arith.mulf %99, %100 : vector<8x32xf32>
    %cst_32 = arith.constant -1.000000e+00 : f32
    %102 = vector.broadcast %cst_32 : f32 to vector<8x32xf32>
    %103 = arith.subf %102, %9 : vector<8x32xf32>
    %cst_33 = arith.constant 2.500000e+00 : f32
    %104 = vector.broadcast %cst_33 : f32 to vector<8x32xf32>
    %105 = arith.mulf %103, %104 : vector<8x32xf32>
    %106 = arith.mulf %101, %23 : vector<8x32xf32>
    %107 = arith.mulf %105, %30 : vector<8x32xf32>
    %108 = arith.addf %106, %107 : vector<8x32xf32>
    %cst_34 = arith.constant -1.400000e+00 : f32
    %109 = vector.broadcast %cst_34 : f32 to vector<8x32xf32>
    %110 = arith.subf %9, %109 : vector<8x32xf32>
    %cst_35 = arith.constant 2.500000e+00 : f32
    %111 = vector.broadcast %cst_35 : f32 to vector<8x32xf32>
    %112 = arith.mulf %110, %111 : vector<8x32xf32>
    %cst_36 = arith.constant -6.000000e-01 : f32
    %113 = vector.broadcast %cst_36 : f32 to vector<8x32xf32>
    %114 = arith.subf %113, %9 : vector<8x32xf32>
    %cst_37 = arith.constant 2.500000e+00 : f32
    %115 = vector.broadcast %cst_37 : f32 to vector<8x32xf32>
    %116 = arith.mulf %114, %115 : vector<8x32xf32>
    %117 = arith.mulf %112, %30 : vector<8x32xf32>
    %118 = arith.mulf %116, %37 : vector<8x32xf32>
    %119 = arith.addf %117, %118 : vector<8x32xf32>
    %cst_38 = arith.constant -1.000000e+00 : f32
    %120 = vector.broadcast %cst_38 : f32 to vector<8x32xf32>
    %121 = arith.subf %9, %120 : vector<8x32xf32>
    %cst_39 = arith.constant 2.500000e+00 : f32
    %122 = vector.broadcast %cst_39 : f32 to vector<8x32xf32>
    %123 = arith.mulf %121, %122 : vector<8x32xf32>
    %cst_40 = arith.constant -2.000000e-01 : f32
    %124 = vector.broadcast %cst_40 : f32 to vector<8x32xf32>
    %125 = arith.subf %124, %9 : vector<8x32xf32>
    %cst_41 = arith.constant 2.500000e+00 : f32
    %126 = vector.broadcast %cst_41 : f32 to vector<8x32xf32>
    %127 = arith.mulf %125, %126 : vector<8x32xf32>
    %128 = arith.mulf %123, %37 : vector<8x32xf32>
    %129 = arith.mulf %127, %44 : vector<8x32xf32>
    %130 = arith.addf %128, %129 : vector<8x32xf32>
    %cst_42 = arith.constant -6.000000e-01 : f32
    %131 = vector.broadcast %cst_42 : f32 to vector<8x32xf32>
    %132 = arith.subf %9, %131 : vector<8x32xf32>
    %cst_43 = arith.constant 2.500000e+00 : f32
    %133 = vector.broadcast %cst_43 : f32 to vector<8x32xf32>
    %134 = arith.mulf %132, %133 : vector<8x32xf32>
    %cst_44 = arith.constant 2.000000e-01 : f32
    %135 = vector.broadcast %cst_44 : f32 to vector<8x32xf32>
    %136 = arith.subf %135, %9 : vector<8x32xf32>
    %cst_45 = arith.constant 2.500000e+00 : f32
    %137 = vector.broadcast %cst_45 : f32 to vector<8x32xf32>
    %138 = arith.mulf %136, %137 : vector<8x32xf32>
    %139 = arith.mulf %134, %44 : vector<8x32xf32>
    %140 = arith.mulf %138, %51 : vector<8x32xf32>
    %141 = arith.addf %139, %140 : vector<8x32xf32>
    %cst_46 = arith.constant -2.000000e-01 : f32
    %142 = vector.broadcast %cst_46 : f32 to vector<8x32xf32>
    %143 = arith.subf %9, %142 : vector<8x32xf32>
    %cst_47 = arith.constant 2.500000e+00 : f32
    %144 = vector.broadcast %cst_47 : f32 to vector<8x32xf32>
    %145 = arith.mulf %143, %144 : vector<8x32xf32>
    %cst_48 = arith.constant 6.000000e-01 : f32
    %146 = vector.broadcast %cst_48 : f32 to vector<8x32xf32>
    %147 = arith.subf %146, %9 : vector<8x32xf32>
    %cst_49 = arith.constant 2.500000e+00 : f32
    %148 = vector.broadcast %cst_49 : f32 to vector<8x32xf32>
    %149 = arith.mulf %147, %148 : vector<8x32xf32>
    %150 = arith.mulf %145, %51 : vector<8x32xf32>
    %151 = arith.mulf %149, %58 : vector<8x32xf32>
    %152 = arith.addf %150, %151 : vector<8x32xf32>
    %cst_50 = arith.constant 2.000000e-01 : f32
    %153 = vector.broadcast %cst_50 : f32 to vector<8x32xf32>
    %154 = arith.subf %9, %153 : vector<8x32xf32>
    %cst_51 = arith.constant 2.500000e+00 : f32
    %155 = vector.broadcast %cst_51 : f32 to vector<8x32xf32>
    %156 = arith.mulf %154, %155 : vector<8x32xf32>
    %cst_52 = arith.constant 1.000000e+00 : f32
    %157 = vector.broadcast %cst_52 : f32 to vector<8x32xf32>
    %158 = arith.subf %157, %9 : vector<8x32xf32>
    %cst_53 = arith.constant 2.500000e+00 : f32
    %159 = vector.broadcast %cst_53 : f32 to vector<8x32xf32>
    %160 = arith.mulf %158, %159 : vector<8x32xf32>
    %161 = arith.mulf %156, %58 : vector<8x32xf32>
    %162 = arith.mulf %160, %65 : vector<8x32xf32>
    %163 = arith.addf %161, %162 : vector<8x32xf32>
    %cst_54 = arith.constant 6.000000e-01 : f32
    %164 = vector.broadcast %cst_54 : f32 to vector<8x32xf32>
    %165 = arith.subf %9, %164 : vector<8x32xf32>
    %cst_55 = arith.constant 2.500000e+00 : f32
    %166 = vector.broadcast %cst_55 : f32 to vector<8x32xf32>
    %167 = arith.mulf %165, %166 : vector<8x32xf32>
    %cst_56 = arith.constant 1.400000e+00 : f32
    %168 = vector.broadcast %cst_56 : f32 to vector<8x32xf32>
    %169 = arith.subf %168, %9 : vector<8x32xf32>
    %cst_57 = arith.constant 2.500000e+00 : f32
    %170 = vector.broadcast %cst_57 : f32 to vector<8x32xf32>
    %171 = arith.mulf %169, %170 : vector<8x32xf32>
    %172 = arith.mulf %167, %65 : vector<8x32xf32>
    %173 = arith.mulf %171, %72 : vector<8x32xf32>
    %174 = arith.addf %172, %173 : vector<8x32xf32>
    %cst_58 = arith.constant 1.000000e+00 : f32
    %175 = vector.broadcast %cst_58 : f32 to vector<8x32xf32>
    %176 = arith.subf %9, %175 : vector<8x32xf32>
    %cst_59 = arith.constant 2.500000e+00 : f32
    %177 = vector.broadcast %cst_59 : f32 to vector<8x32xf32>
    %178 = arith.mulf %176, %177 : vector<8x32xf32>
    %cst_60 = arith.constant 1.800000e+00 : f32
    %179 = vector.broadcast %cst_60 : f32 to vector<8x32xf32>
    %180 = arith.subf %179, %9 : vector<8x32xf32>
    %cst_61 = arith.constant 2.500000e+00 : f32
    %181 = vector.broadcast %cst_61 : f32 to vector<8x32xf32>
    %182 = arith.mulf %180, %181 : vector<8x32xf32>
    %183 = arith.mulf %178, %72 : vector<8x32xf32>
    %184 = arith.mulf %182, %79 : vector<8x32xf32>
    %185 = arith.addf %183, %184 : vector<8x32xf32>
    %cst_62 = arith.constant 1.400000e+00 : f32
    %186 = vector.broadcast %cst_62 : f32 to vector<8x32xf32>
    %187 = arith.subf %9, %186 : vector<8x32xf32>
    %cst_63 = arith.constant 2.500000e+00 : f32
    %188 = vector.broadcast %cst_63 : f32 to vector<8x32xf32>
    %189 = arith.mulf %187, %188 : vector<8x32xf32>
    %cst_64 = arith.constant 2.200000e+00 : f32
    %190 = vector.broadcast %cst_64 : f32 to vector<8x32xf32>
    %191 = arith.subf %190, %9 : vector<8x32xf32>
    %cst_65 = arith.constant 2.500000e+00 : f32
    %192 = vector.broadcast %cst_65 : f32 to vector<8x32xf32>
    %193 = arith.mulf %191, %192 : vector<8x32xf32>
    %194 = arith.mulf %189, %79 : vector<8x32xf32>
    %195 = arith.mulf %193, %86 : vector<8x32xf32>
    %196 = arith.addf %194, %195 : vector<8x32xf32>
    %cst_66 = arith.constant -2.200000e+00 : f32
    %197 = vector.broadcast %cst_66 : f32 to vector<8x32xf32>
    %198 = arith.subf %9, %197 : vector<8x32xf32>
    %cst_67 = arith.constant 1.250000e+00 : f32
    %199 = vector.broadcast %cst_67 : f32 to vector<8x32xf32>
    %200 = arith.mulf %198, %199 : vector<8x32xf32>
    %cst_68 = arith.constant -1.000000e+00 : f32
    %201 = vector.broadcast %cst_68 : f32 to vector<8x32xf32>
    %202 = arith.subf %201, %9 : vector<8x32xf32>
    %cst_69 = arith.constant 1.250000e+00 : f32
    %203 = vector.broadcast %cst_69 : f32 to vector<8x32xf32>
    %204 = arith.mulf %202, %203 : vector<8x32xf32>
    %205 = arith.mulf %200, %97 : vector<8x32xf32>
    %206 = arith.mulf %204, %108 : vector<8x32xf32>
    %207 = arith.addf %205, %206 : vector<8x32xf32>
    %cst_70 = arith.constant -1.800000e+00 : f32
    %208 = vector.broadcast %cst_70 : f32 to vector<8x32xf32>
    %209 = arith.subf %9, %208 : vector<8x32xf32>
    %cst_71 = arith.constant 1.250000e+00 : f32
    %210 = vector.broadcast %cst_71 : f32 to vector<8x32xf32>
    %211 = arith.mulf %209, %210 : vector<8x32xf32>
    %cst_72 = arith.constant -6.000000e-01 : f32
    %212 = vector.broadcast %cst_72 : f32 to vector<8x32xf32>
    %213 = arith.subf %212, %9 : vector<8x32xf32>
    %cst_73 = arith.constant 1.250000e+00 : f32
    %214 = vector.broadcast %cst_73 : f32 to vector<8x32xf32>
    %215 = arith.mulf %213, %214 : vector<8x32xf32>
    %216 = arith.mulf %211, %108 : vector<8x32xf32>
    %217 = arith.mulf %215, %119 : vector<8x32xf32>
    %218 = arith.addf %216, %217 : vector<8x32xf32>
    %cst_74 = arith.constant -1.400000e+00 : f32
    %219 = vector.broadcast %cst_74 : f32 to vector<8x32xf32>
    %220 = arith.subf %9, %219 : vector<8x32xf32>
    %cst_75 = arith.constant 1.250000e+00 : f32
    %221 = vector.broadcast %cst_75 : f32 to vector<8x32xf32>
    %222 = arith.mulf %220, %221 : vector<8x32xf32>
    %cst_76 = arith.constant -2.000000e-01 : f32
    %223 = vector.broadcast %cst_76 : f32 to vector<8x32xf32>
    %224 = arith.subf %223, %9 : vector<8x32xf32>
    %cst_77 = arith.constant 1.250000e+00 : f32
    %225 = vector.broadcast %cst_77 : f32 to vector<8x32xf32>
    %226 = arith.mulf %224, %225 : vector<8x32xf32>
    %227 = arith.mulf %222, %119 : vector<8x32xf32>
    %228 = arith.mulf %226, %130 : vector<8x32xf32>
    %229 = arith.addf %227, %228 : vector<8x32xf32>
    %cst_78 = arith.constant -1.000000e+00 : f32
    %230 = vector.broadcast %cst_78 : f32 to vector<8x32xf32>
    %231 = arith.subf %9, %230 : vector<8x32xf32>
    %cst_79 = arith.constant 1.250000e+00 : f32
    %232 = vector.broadcast %cst_79 : f32 to vector<8x32xf32>
    %233 = arith.mulf %231, %232 : vector<8x32xf32>
    %cst_80 = arith.constant 2.000000e-01 : f32
    %234 = vector.broadcast %cst_80 : f32 to vector<8x32xf32>
    %235 = arith.subf %234, %9 : vector<8x32xf32>
    %cst_81 = arith.constant 1.250000e+00 : f32
    %236 = vector.broadcast %cst_81 : f32 to vector<8x32xf32>
    %237 = arith.mulf %235, %236 : vector<8x32xf32>
    %238 = arith.mulf %233, %130 : vector<8x32xf32>
    %239 = arith.mulf %237, %141 : vector<8x32xf32>
    %240 = arith.addf %238, %239 : vector<8x32xf32>
    %cst_82 = arith.constant -6.000000e-01 : f32
    %241 = vector.broadcast %cst_82 : f32 to vector<8x32xf32>
    %242 = arith.subf %9, %241 : vector<8x32xf32>
    %cst_83 = arith.constant 1.250000e+00 : f32
    %243 = vector.broadcast %cst_83 : f32 to vector<8x32xf32>
    %244 = arith.mulf %242, %243 : vector<8x32xf32>
    %cst_84 = arith.constant 6.000000e-01 : f32
    %245 = vector.broadcast %cst_84 : f32 to vector<8x32xf32>
    %246 = arith.subf %245, %9 : vector<8x32xf32>
    %cst_85 = arith.constant 1.250000e+00 : f32
    %247 = vector.broadcast %cst_85 : f32 to vector<8x32xf32>
    %248 = arith.mulf %246, %247 : vector<8x32xf32>
    %249 = arith.mulf %244, %141 : vector<8x32xf32>
    %250 = arith.mulf %248, %152 : vector<8x32xf32>
    %251 = arith.addf %249, %250 : vector<8x32xf32>
    %cst_86 = arith.constant -2.000000e-01 : f32
    %252 = vector.broadcast %cst_86 : f32 to vector<8x32xf32>
    %253 = arith.subf %9, %252 : vector<8x32xf32>
    %cst_87 = arith.constant 1.250000e+00 : f32
    %254 = vector.broadcast %cst_87 : f32 to vector<8x32xf32>
    %255 = arith.mulf %253, %254 : vector<8x32xf32>
    %cst_88 = arith.constant 1.000000e+00 : f32
    %256 = vector.broadcast %cst_88 : f32 to vector<8x32xf32>
    %257 = arith.subf %256, %9 : vector<8x32xf32>
    %cst_89 = arith.constant 1.250000e+00 : f32
    %258 = vector.broadcast %cst_89 : f32 to vector<8x32xf32>
    %259 = arith.mulf %257, %258 : vector<8x32xf32>
    %260 = arith.mulf %255, %152 : vector<8x32xf32>
    %261 = arith.mulf %259, %163 : vector<8x32xf32>
    %262 = arith.addf %260, %261 : vector<8x32xf32>
    %cst_90 = arith.constant 2.000000e-01 : f32
    %263 = vector.broadcast %cst_90 : f32 to vector<8x32xf32>
    %264 = arith.subf %9, %263 : vector<8x32xf32>
    %cst_91 = arith.constant 1.250000e+00 : f32
    %265 = vector.broadcast %cst_91 : f32 to vector<8x32xf32>
    %266 = arith.mulf %264, %265 : vector<8x32xf32>
    %cst_92 = arith.constant 1.400000e+00 : f32
    %267 = vector.broadcast %cst_92 : f32 to vector<8x32xf32>
    %268 = arith.subf %267, %9 : vector<8x32xf32>
    %cst_93 = arith.constant 1.250000e+00 : f32
    %269 = vector.broadcast %cst_93 : f32 to vector<8x32xf32>
    %270 = arith.mulf %268, %269 : vector<8x32xf32>
    %271 = arith.mulf %266, %163 : vector<8x32xf32>
    %272 = arith.mulf %270, %174 : vector<8x32xf32>
    %273 = arith.addf %271, %272 : vector<8x32xf32>
    %cst_94 = arith.constant 6.000000e-01 : f32
    %274 = vector.broadcast %cst_94 : f32 to vector<8x32xf32>
    %275 = arith.subf %9, %274 : vector<8x32xf32>
    %cst_95 = arith.constant 1.250000e+00 : f32
    %276 = vector.broadcast %cst_95 : f32 to vector<8x32xf32>
    %277 = arith.mulf %275, %276 : vector<8x32xf32>
    %cst_96 = arith.constant 1.800000e+00 : f32
    %278 = vector.broadcast %cst_96 : f32 to vector<8x32xf32>
    %279 = arith.subf %278, %9 : vector<8x32xf32>
    %cst_97 = arith.constant 1.250000e+00 : f32
    %280 = vector.broadcast %cst_97 : f32 to vector<8x32xf32>
    %281 = arith.mulf %279, %280 : vector<8x32xf32>
    %282 = arith.mulf %277, %174 : vector<8x32xf32>
    %283 = arith.mulf %281, %185 : vector<8x32xf32>
    %284 = arith.addf %282, %283 : vector<8x32xf32>
    %cst_98 = arith.constant 1.000000e+00 : f32
    %285 = vector.broadcast %cst_98 : f32 to vector<8x32xf32>
    %286 = arith.subf %9, %285 : vector<8x32xf32>
    %cst_99 = arith.constant 1.250000e+00 : f32
    %287 = vector.broadcast %cst_99 : f32 to vector<8x32xf32>
    %288 = arith.mulf %286, %287 : vector<8x32xf32>
    %cst_100 = arith.constant 2.200000e+00 : f32
    %289 = vector.broadcast %cst_100 : f32 to vector<8x32xf32>
    %290 = arith.subf %289, %9 : vector<8x32xf32>
    %cst_101 = arith.constant 1.250000e+00 : f32
    %291 = vector.broadcast %cst_101 : f32 to vector<8x32xf32>
    %292 = arith.mulf %290, %291 : vector<8x32xf32>
    %293 = arith.mulf %288, %185 : vector<8x32xf32>
    %294 = arith.mulf %292, %196 : vector<8x32xf32>
    %295 = arith.addf %293, %294 : vector<8x32xf32>
    %cst_102 = arith.constant -2.200000e+00 : f32
    %296 = vector.broadcast %cst_102 : f32 to vector<8x32xf32>
    %297 = arith.subf %9, %296 : vector<8x32xf32>
    %cst_103 = arith.constant 0.833333313 : f32
    %298 = vector.broadcast %cst_103 : f32 to vector<8x32xf32>
    %299 = arith.mulf %297, %298 : vector<8x32xf32>
    %cst_104 = arith.constant -6.000000e-01 : f32
    %300 = vector.broadcast %cst_104 : f32 to vector<8x32xf32>
    %301 = arith.subf %300, %9 : vector<8x32xf32>
    %cst_105 = arith.constant 0.833333313 : f32
    %302 = vector.broadcast %cst_105 : f32 to vector<8x32xf32>
    %303 = arith.mulf %301, %302 : vector<8x32xf32>
    %304 = arith.mulf %299, %207 : vector<8x32xf32>
    %305 = arith.mulf %303, %218 : vector<8x32xf32>
    %306 = arith.addf %304, %305 : vector<8x32xf32>
    %cst_106 = arith.constant -1.800000e+00 : f32
    %307 = vector.broadcast %cst_106 : f32 to vector<8x32xf32>
    %308 = arith.subf %9, %307 : vector<8x32xf32>
    %cst_107 = arith.constant 0.833333313 : f32
    %309 = vector.broadcast %cst_107 : f32 to vector<8x32xf32>
    %310 = arith.mulf %308, %309 : vector<8x32xf32>
    %cst_108 = arith.constant -2.000000e-01 : f32
    %311 = vector.broadcast %cst_108 : f32 to vector<8x32xf32>
    %312 = arith.subf %311, %9 : vector<8x32xf32>
    %cst_109 = arith.constant 0.833333313 : f32
    %313 = vector.broadcast %cst_109 : f32 to vector<8x32xf32>
    %314 = arith.mulf %312, %313 : vector<8x32xf32>
    %315 = arith.mulf %310, %218 : vector<8x32xf32>
    %316 = arith.mulf %314, %229 : vector<8x32xf32>
    %317 = arith.addf %315, %316 : vector<8x32xf32>
    %cst_110 = arith.constant -1.400000e+00 : f32
    %318 = vector.broadcast %cst_110 : f32 to vector<8x32xf32>
    %319 = arith.subf %9, %318 : vector<8x32xf32>
    %cst_111 = arith.constant 0.833333313 : f32
    %320 = vector.broadcast %cst_111 : f32 to vector<8x32xf32>
    %321 = arith.mulf %319, %320 : vector<8x32xf32>
    %cst_112 = arith.constant 2.000000e-01 : f32
    %322 = vector.broadcast %cst_112 : f32 to vector<8x32xf32>
    %323 = arith.subf %322, %9 : vector<8x32xf32>
    %cst_113 = arith.constant 0.833333313 : f32
    %324 = vector.broadcast %cst_113 : f32 to vector<8x32xf32>
    %325 = arith.mulf %323, %324 : vector<8x32xf32>
    %326 = arith.mulf %321, %229 : vector<8x32xf32>
    %327 = arith.mulf %325, %240 : vector<8x32xf32>
    %328 = arith.addf %326, %327 : vector<8x32xf32>
    %cst_114 = arith.constant -1.000000e+00 : f32
    %329 = vector.broadcast %cst_114 : f32 to vector<8x32xf32>
    %330 = arith.subf %9, %329 : vector<8x32xf32>
    %cst_115 = arith.constant 0.833333313 : f32
    %331 = vector.broadcast %cst_115 : f32 to vector<8x32xf32>
    %332 = arith.mulf %330, %331 : vector<8x32xf32>
    %cst_116 = arith.constant 6.000000e-01 : f32
    %333 = vector.broadcast %cst_116 : f32 to vector<8x32xf32>
    %334 = arith.subf %333, %9 : vector<8x32xf32>
    %cst_117 = arith.constant 0.833333313 : f32
    %335 = vector.broadcast %cst_117 : f32 to vector<8x32xf32>
    %336 = arith.mulf %334, %335 : vector<8x32xf32>
    %337 = arith.mulf %332, %240 : vector<8x32xf32>
    %338 = arith.mulf %336, %251 : vector<8x32xf32>
    %339 = arith.addf %337, %338 : vector<8x32xf32>
    %cst_118 = arith.constant -6.000000e-01 : f32
    %340 = vector.broadcast %cst_118 : f32 to vector<8x32xf32>
    %341 = arith.subf %9, %340 : vector<8x32xf32>
    %cst_119 = arith.constant 0.833333313 : f32
    %342 = vector.broadcast %cst_119 : f32 to vector<8x32xf32>
    %343 = arith.mulf %341, %342 : vector<8x32xf32>
    %cst_120 = arith.constant 1.000000e+00 : f32
    %344 = vector.broadcast %cst_120 : f32 to vector<8x32xf32>
    %345 = arith.subf %344, %9 : vector<8x32xf32>
    %cst_121 = arith.constant 0.833333313 : f32
    %346 = vector.broadcast %cst_121 : f32 to vector<8x32xf32>
    %347 = arith.mulf %345, %346 : vector<8x32xf32>
    %348 = arith.mulf %343, %251 : vector<8x32xf32>
    %349 = arith.mulf %347, %262 : vector<8x32xf32>
    %350 = arith.addf %348, %349 : vector<8x32xf32>
    %cst_122 = arith.constant -2.000000e-01 : f32
    %351 = vector.broadcast %cst_122 : f32 to vector<8x32xf32>
    %352 = arith.subf %9, %351 : vector<8x32xf32>
    %cst_123 = arith.constant 0.833333313 : f32
    %353 = vector.broadcast %cst_123 : f32 to vector<8x32xf32>
    %354 = arith.mulf %352, %353 : vector<8x32xf32>
    %cst_124 = arith.constant 1.400000e+00 : f32
    %355 = vector.broadcast %cst_124 : f32 to vector<8x32xf32>
    %356 = arith.subf %355, %9 : vector<8x32xf32>
    %cst_125 = arith.constant 0.833333313 : f32
    %357 = vector.broadcast %cst_125 : f32 to vector<8x32xf32>
    %358 = arith.mulf %356, %357 : vector<8x32xf32>
    %359 = arith.mulf %354, %262 : vector<8x32xf32>
    %360 = arith.mulf %358, %273 : vector<8x32xf32>
    %361 = arith.addf %359, %360 : vector<8x32xf32>
    %cst_126 = arith.constant 2.000000e-01 : f32
    %362 = vector.broadcast %cst_126 : f32 to vector<8x32xf32>
    %363 = arith.subf %9, %362 : vector<8x32xf32>
    %cst_127 = arith.constant 0.833333313 : f32
    %364 = vector.broadcast %cst_127 : f32 to vector<8x32xf32>
    %365 = arith.mulf %363, %364 : vector<8x32xf32>
    %cst_128 = arith.constant 1.800000e+00 : f32
    %366 = vector.broadcast %cst_128 : f32 to vector<8x32xf32>
    %367 = arith.subf %366, %9 : vector<8x32xf32>
    %cst_129 = arith.constant 0.833333313 : f32
    %368 = vector.broadcast %cst_129 : f32 to vector<8x32xf32>
    %369 = arith.mulf %367, %368 : vector<8x32xf32>
    %370 = arith.mulf %365, %273 : vector<8x32xf32>
    %371 = arith.mulf %369, %284 : vector<8x32xf32>
    %372 = arith.addf %370, %371 : vector<8x32xf32>
    %cst_130 = arith.constant 6.000000e-01 : f32
    %373 = vector.broadcast %cst_130 : f32 to vector<8x32xf32>
    %374 = arith.subf %9, %373 : vector<8x32xf32>
    %cst_131 = arith.constant 0.833333313 : f32
    %375 = vector.broadcast %cst_131 : f32 to vector<8x32xf32>
    %376 = arith.mulf %374, %375 : vector<8x32xf32>
    %cst_132 = arith.constant 2.200000e+00 : f32
    %377 = vector.broadcast %cst_132 : f32 to vector<8x32xf32>
    %378 = arith.subf %377, %9 : vector<8x32xf32>
    %cst_133 = arith.constant 0.833333313 : f32
    %379 = vector.broadcast %cst_133 : f32 to vector<8x32xf32>
    %380 = arith.mulf %378, %379 : vector<8x32xf32>
    %381 = arith.mulf %376, %284 : vector<8x32xf32>
    %382 = arith.mulf %380, %295 : vector<8x32xf32>
    %383 = arith.addf %381, %382 : vector<8x32xf32>
    %cst_134 = arith.constant 0.000000e+00 : f32
    %384 = vector.broadcast %cst_134 : f32 to vector<8x32xf32>
    %385 = arith.subf %384, %9 : vector<8x32xf32>
    %386 = math.exp %385 : vector<8x32xf32>
    %cst_135 = arith.constant 1.000000e+00 : f32
    %387 = vector.broadcast %cst_135 : f32 to vector<8x32xf32>
    %388 = arith.addf %387, %386 : vector<8x32xf32>
    %389 = tpu.reciprocal %388 {approx = true} : vector<8x32xf32> -> vector<8x32xf32>
    %390 = arith.mulf %9, %389 : vector<8x32xf32>
    %391 = tpu.concatenate %390, %306, %317, %328, %339, %350, %361, %372, %383 in 1 : vector<8x32xf32>, vector<8x32xf32>, vector<8x32xf32>, vector<8x32xf32>, vector<8x32xf32>, vector<8x32xf32>, vector<8x32xf32>, vector<8x32xf32>, vector<8x32xf32> -> vector<8x288xf32>
    %392 = arith.truncf %391 : vector<8x288xf32> to vector<8x288xbf16>
    %c0_136 = arith.constant 0 : index
    %c0_137 = arith.constant 0 : index
    %393 = vector.load %arg2[%c0_136, %c0_137] : memref<288x32xbf16, #tpu.memory_space<vmem>>, vector<288x32xbf16>
    %cst_138 = arith.constant dense<0.000000e+00> : vector<8x32xf32>
    %394 = tpu.matmul %392, %393, %cst_138 {dimension_numbers = #tpu.dot_dimension_numbers<[1], [0], [0], [1], [0, 0, 1, 1], [], []>} : vector<8x288xbf16>, vector<288x32xbf16>, vector<8x32xf32> -> vector<8x32xf32>
    %c0_139 = arith.constant 0 : index
    %c0_140 = arith.constant 0 : index
    %395 = vector.load %arg3[%c0_139, %c0_140] : memref<8x32xf32, #tpu.memory_space<vmem>>, vector<8x32xf32>
    tpu.vector_store %arg3[%c0_139, %c0_140], %394 {strides = array<i32>} : memref<8x32xf32, #tpu.memory_space<vmem>>, vector<8x32xf32>,
    %c8_i32 = arith.constant 8 : i32
    %396 = arith.muli %arg0, %c8_i32 : i32
    %397 = tpu.iota {dimensions = array<i32: 0>} : vector<8x32xi32>
    %398 = vector.broadcast %396 : i32 to vector<8x32xi32>
    %399 = arith.addi %397, %398 : vector<8x32xi32>
    %c8_i32_141 = arith.constant 8 : i32
    %400 = vector.broadcast %c8_i32_141 : i32 to vector<8x32xi32>
    %401 = arith.cmpi slt, %399, %400 : vector<8x32xi32>
    %cst_142 = arith.constant 0.000000e+00 : f32
    %402 = vector.broadcast %cst_142 : f32 to vector<8x32xf32>
    %403 = arith.select %401, %394, %402 : vector<8x32xi1>, vector<8x32xf32>
    %cst_143 = arith.constant dense<0.000000e+00> : vector<32xf32>
    %404 = vector.multi_reduction <add>, %403, %cst_143 [0] : vector<8x32xf32> to vector<32xf32>
    %405 = vector.shape_cast %404 : vector<32xf32> to vector<1x32xf32>
    %406 = arith.mulf %403, %403 : vector<8x32xf32>
    %cst_144 = arith.constant dense<0.000000e+00> : vector<32xf32>
    %407 = vector.multi_reduction <add>, %406, %cst_144 [0] : vector<8x32xf32> to vector<32xf32>
    %408 = vector.shape_cast %407 : vector<32xf32> to vector<1x32xf32>
    %409 = tpu.concatenate %405, %408 in 0 : vector<1x32xf32>, vector<1x32xf32> -> vector<2x32xf32>
    %410 = vector.shape_cast %409 : vector<2x32xf32> to vector<1x2x32xf32>
    %c0_145 = arith.constant 0 : index
    %c0_146 = arith.constant 0 : index
    %c0_147 = arith.constant 0 : index
    %411 = vector.load %arg4[%c0_145, %c0_146, %c0_147] : memref<1x2x32xf32, #tpu.memory_space<vmem>>, vector<1x2x32xf32>
    tpu.vector_store %arg4[%c0_145, %c0_146, %c0_147], %410 {strides = array<i32>} : memref<1x2x32xf32, #tpu.memory_space<vmem>>, vector<1x2x32xf32>,
    return
  }
  func.func @transform_0(%arg0: i32) -> (i32, i32) {
    %c0_i32 = arith.constant 0 : i32
    %c0_i32_0 = arith.constant 0 : i32
    return %arg0, %c0_i32 : i32, i32
  }
  func.func @transform_1(%arg0: i32) -> (i32, i32) {
    %c0_i32 = arith.constant 0 : i32
    %c0_i32_0 = arith.constant 0 : i32
    %c0_i32_1 = arith.constant 0 : i32
    return %c0_i32, %c0_i32_0 : i32, i32
  }
  func.func @transform_2(%arg0: i32) -> (i32, i32) {
    %c0_i32 = arith.constant 0 : i32
    %c0_i32_0 = arith.constant 0 : i32
    return %arg0, %c0_i32 : i32, i32
  }
  func.func @transform_3(%arg0: i32) -> (i32, i32, i32) {
    %c0_i32 = arith.constant 0 : i32
    %c0_i32_0 = arith.constant 0 : i32
    %c0_i32_1 = arith.constant 0 : i32
    return %arg0, %c0_i32, %c0_i32_0 : i32, i32, i32
  }
  func.func @transform_4(%arg0: i32) -> (i32, i32) {
    %c0_i32 = arith.constant 0 : i32
    %c0_i32_0 = arith.constant 0 : i32
    return %arg0, %c0_i32 : i32, i32
  }
}

</mosaic_0001>

<llo_original>
// kernel: tpu_custom_call.1
$region0: #{tpu_custom_call.1}
  #allocation0 [shape = 'u32[]', space=smem, size = 0x4, offset = 0x4, fixed_abs, tag = 'smem constant byte address 0x4 - core index']
  #allocation1 [shape = 'u32[72,128]{1,0:T(1,128)}', space=vmem, size = 0x9000, scoped, tag = 'internal scratch']
  %s0 = inlined_call_operand.hbm [shape: f32[8,128], index: 0, kind: input, shape index: {}]
  %s1 = inlined_call_operand.hbm [shape: f32[8,128], index: 1, kind: output, shape index: {}]
  %s2 = sld [smem:[#allocation0]]
  $region18: #{tpu_custom_call.1} parent=0
    _
  %s4 = ssub.s32 1, %s2
  %s5 = scalar_select 0, %s4, %s2
  $region1: #{tpu_custom_call.1} parent=0
    #allocation2 [shape = 'u8[4096]{0}', space=vmem, size = 0x1000, scoped, tag = 'input window, operand 0, single buffered']
    #allocation3 [shape = 's32[1]{0}', space=sflag, size = 0x4, scoped, tag = 'scoped memory for tpu_custom_call.1']
    #allocation4 [shape = 's32[1]{0}', space=sflag, size = 0x4, scoped, tag = 'scoped memory for tpu_custom_call.1']
    #allocation5 [shape = 'u8[4096]{0}', space=vmem, size = 0x1000, scoped, tag = 'output window, operand 0, single buffered']
    %6 = vsyncpa [#allocation3], 0
    %7 = vsyncpa [#allocation4], 0
    // Predicated region
    $region2: #{tpu_custom_call.1} parent=1 // pred_check
      _
    $region3: #{tpu_custom_call.1} parent=1 // pred_check_branch
      %9 = sbr.rel (0) target = $region5
    $region4: #{tpu_custom_call.1} parent=1 // pred_region
      %11 = vsyncadd [#allocation3], 0
      %s13 = sshll.u32 %s0, 4
      %s14 = int_to_ptr.hbm [resolvable:$true] %s13
      %s15 = sshll.u32 [#allocation2], 4
      %s16 = int_to_ptr.vmem [resolvable:$true] %s15
      %18 = dma.hbm_to_vmem [thread:$0]  %s14, 128, %s16, [#allocation3]
    $region5: #{tpu_custom_call.1} parent=1 // pred_fallthru
      _
    // Predicated region
    $region6: #{tpu_custom_call.1} parent=1 // pred_check
      _
    $region7: #{tpu_custom_call.1} parent=1 // pred_check_branch
      %20 = sbr.rel (0) target = $region9
    $region8: #{tpu_custom_call.1} parent=1 // pred_region
      %22 = dma.done [#allocation3], 128
    $region9: #{tpu_custom_call.1} parent=1 // pred_fallthru
      _
    %v23 = vld [vmem:[#allocation2] sm:$0xff]
    %24 = vst [vmem:[#allocation5] sm:$0xff] %v23
    // Predicated region
    $region10: #{tpu_custom_call.1} parent=1 // pred_check
      _
    $region11: #{tpu_custom_call.1} parent=1 // pred_check_branch
      %26 = sbr.rel (0) target = $region13
    $region12: #{tpu_custom_call.1} parent=1 // pred_region
      %28 = vsyncadd [#allocation4], 0
      %s30 = sshll.u32 [#allocation5], 4
      %s31 = int_to_ptr.vmem [resolvable:$true] %s30
      %s32 = sshll.u32 %s1, 4
      %s33 = int_to_ptr.hbm [resolvable:$true] %s32
      %35 = dma.vmem_to_hbm [thread:$0]  %s31, 128, %s33, [#allocation4]
    $region13: #{tpu_custom_call.1} parent=1 // pred_fallthru
      _
    // Predicated region
    $region14: #{tpu_custom_call.1} parent=1 // pred_check
      _
    $region15: #{tpu_custom_call.1} parent=1 // pred_check_branch
      %37 = sbr.rel (0) target = $region17
    $region16: #{tpu_custom_call.1} parent=1 // pred_region
      %39 = dma.done [#allocation4], 128
    $region17: #{tpu_custom_call.1} parent=1 // pred_fallthru
      _
    %40 = vsyncpa [#allocation3], 1
    %41 = vsyncpa [#allocation4], 1

// kernel: tpu_custom_call.1
$region0: #{tpu_custom_call.1}
  #allocation0 [shape = 'u32[]', space=smem, size = 0x4, offset = 0x4, fixed_abs, tag = 'smem constant byte address 0x4 - core index']
  #allocation1 [shape = 'u32[72,128]{1,0:T(1,128)}', space=vmem, size = 0x9000, scoped, tag = 'internal scratch']
  %s0 = inlined_call_operand.vmem [shape: f32[8,32], index: 0, kind: input, shape index: {}]
  %s1 = inlined_call_operand.vmem [shape: bf16[288,32], index: 1, kind: input, shape index: {}]
  %s2 = inlined_call_operand.hbm [shape: f32[8,32], index: 2, kind: output, shape index: {0}]
  %s3 = inlined_call_operand.hbm [shape: f32[1,2,32], index: 3, kind: output, shape index: {1}]
  %s4 = inlined_call_operand.vmem [shape: f32[8,1], index: 4, kind: output, shape index: {2}]
  %5 = xla_tuple %s2, %s3, %s4
  %s6 = sld [smem:[#allocation0]]
  $region34: #{tpu_custom_call.1} parent=0
    _
  %s8 = ssub.s32 1, %s6
  %s9 = scalar_select 0, %s8, %s6
  $region1: #{tpu_custom_call.1} parent=0
    #allocation2 [shape = 'u8[4096]{0}', space=vmem, size = 0x1000, scoped, tag = 'output window, operand 0, single buffered']
    #allocation3 [shape = 's32[1]{0}', space=sflag, size = 0x4, scoped, tag = 'scoped memory for tpu_custom_call.1']
    #allocation4 [shape = 'u8[1024]{0}', space=vmem, size = 0x400, scoped, tag = 'output window, operand 1, single buffered']
    #allocation5 [shape = 's32[1]{0}', space=sflag, size = 0x4, scoped, tag = 'scoped memory for tpu_custom_call.1']
    %10 = vsyncpa [#allocation3], 0
    %11 = vsyncpa [#allocation5], 0
    // Predicated region
    $region2: #{tpu_custom_call.1} parent=1 // pred_check
      _
    $region3: #{tpu_custom_call.1} parent=1 // pred_check_branch
      %13 = sbr.rel (0) target = $region5
    $region4: #{tpu_custom_call.1} parent=1 // pred_region
      _
    $region5: #{tpu_custom_call.1} parent=1 // pred_fallthru
      _
    // Predicated region
    $region6: #{tpu_custom_call.1} parent=1 // pred_check
      _
    $region7: #{tpu_custom_call.1} parent=1 // pred_check_branch
      %15 = sbr.rel (0) target = $region9
    $region8: #{tpu_custom_call.1} parent=1 // pred_region
      _
    $region9: #{tpu_custom_call.1} parent=1 // pred_fallthru
      _
    %v17 = vld [vmem:[%s0] sm:$0xff]
    %vm18 = vcmask 261120
    %v19 = vsel %vm18, %v17, 0.0
    %20 = vadd.xlane.f32.xlu0 %v19
    %v21 = vpop.xlane.xlu0 %20
    %vm22 = vcmask 7168
    %23 = vst.msk [vmem:[%s4] sm:$0xff] %vm22, %v21
    %v24 = vrcp.pop %v21
    %v25 = vmul.f32 %v24, 10000.0
    %v26 = vmul.f32 %v17, %v25
    %v27 = vadd.f32 %v26, 1.0
    %v28 = vlog2.pop %v27
    %v29 = vmul.f32 %v28, 0.6931472
    %v30 = vmul.f32 -0.5, %v26
    %v31 = vadd.f32 %v30, 1.0
    %v32 = vmul.f32 %v31, %v26
    %v33 = vand.u32 2147483647, %v26
    %vm34 = vcmp.lt.f32.partialorder %v33, 0.0004427343
    %v35 = vsel %vm34, %v32, %v29
    %vm36 = vcmp.ge.f32.partialorder %v35, -2.2
    %vm37 = vcmp.lt.f32.partialorder %v35, -1.8
    %vm38 = vmand %vm36, %vm37
    %v39 = vsel %vm38, 1, 0
    %v40 = vcvt.s32.f32 %v39
    %vm41 = vcmp.ge.f32.partialorder %v35, -1.8
    %vm42 = vcmp.lt.f32.partialorder %v35, -1.4
    %vm43 = vmand %vm41, %vm42
    %v44 = vsel %vm43, 1, 0
    %v45 = vcvt.s32.f32 %v44
    %vm46 = vcmp.ge.f32.partialorder %v35, -1.4
    %vm47 = vcmp.lt.f32.partialorder %v35, -1.0
    %vm48 = vmand %vm46, %vm47
    %v49 = vsel %vm48, 1, 0
    %v50 = vcvt.s32.f32 %v49
    %vm51 = vcmp.ge.f32.partialorder %v35, -1.0
    %vm52 = vcmp.lt.f32.partialorder %v35, -0.6
    %vm53 = vmand %vm51, %vm52
    %v54 = vsel %vm53, 1, 0
    %v55 = vcvt.s32.f32 %v54
    %vm56 = vcmp.ge.f32.partialorder %v35, -0.6
    %vm57 = vcmp.lt.f32.partialorder %v35, -0.2
    %vm58 = vmand %vm56, %vm57
    %v59 = vsel %vm58, 1, 0
    %v60 = vcvt.s32.f32 %v59
    %vm61 = vcmp.ge.f32.partialorder %v35, -0.2
    %vm62 = vcmp.lt.f32.partialorder %v35, 0.2
    %vm63 = vmand %vm61, %vm62
    %v64 = vsel %vm63, 1, 0
    %v65 = vcvt.s32.f32 %v64
    %vm66 = vcmp.ge.f32.partialorder %v35, 0.2
    %vm67 = vcmp.lt.f32.partialorder %v35, 0.6
    %vm68 = vmand %vm66, %vm67
    %v69 = vsel %vm68, 1, 0
    %v70 = vcvt.s32.f32 %v69
    %vm71 = vcmp.ge.f32.partialorder %v35, 0.6
    %vm72 = vcmp.lt.f32.partialorder %v35, 1.0
    %vm73 = vmand %vm71, %vm72
    %v74 = vsel %vm73, 1, 0
    %v75 = vcvt.s32.f32 %v74
    %vm76 = vcmp.ge.f32.partialorder %v35, 1.0
    %vm77 = vcmp.lt.f32.partialorder %v35, 1.4
    %vm78 = vmand %vm76, %vm77
    %v79 = vsel %vm78, 1, 0
    %v80 = vcvt.s32.f32 %v79
    %vm81 = vcmp.ge.f32.partialorder %v35, 1.4
    %vm82 = vcmp.lt.f32.partialorder %v35, 1.8
    %vm83 = vmand %vm81, %vm82
    %v84 = vsel %vm83, 1, 0
    %v85 = vcvt.s32.f32 %v84
    %vm86 = vcmp.ge.f32.partialorder %v35, 1.8
    %vm87 = vcmp.lt.f32.partialorder %v35, 2.2
    %vm88 = vmand %vm86, %vm87
    %v89 = vsel %vm88, 1, 0
    %v90 = vcvt.s32.f32 %v89
    %v91 = vsub.f32 %v35, -2.2
    %v92 = vmul.f32 %v91, 2.5
    %v93 = vsub.f32 -1.4, %v35
    %v94 = vmul.f32 %v93, 2.5
    %v95 = vmul.f32 %v92, %v40
    %v96 = vmul.f32 %v94, %v45
    %v97 = vadd.f32 %v95, %v96
    %v98 = vsub.f32 %v35, -1.8
    %v99 = vmul.f32 %v98, 2.5
    %v100 = vsub.f32 -1.0, %v35
    %v101 = vmul.f32 %v100, 2.5
    %v102 = vmul.f32 %v99, %v45
    %v103 = vmul.f32 %v101, %v50
    %v104 = vadd.f32 %v102, %v103
    %v105 = vsub.f32 %v35, -1.4
    %v106 = vmul.f32 %v105, 2.5
    %v107 = vsub.f32 -0.6, %v35
    %v108 = vmul.f32 %v107, 2.5
    %v109 = vmul.f32 %v106, %v50
    %v110 = vmul.f32 %v108, %v55
    %v111 = vadd.f32 %v109, %v110
    %v112 = vsub.f32 %v35, -1.0
    %v113 = vmul.f32 %v112, 2.5
    %v114 = vsub.f32 -0.2, %v35
    %v115 = vmul.f32 %v114, 2.5
    %v116 = vmul.f32 %v113, %v55
    %v117 = vmul.f32 %v115, %v60
    %v118 = vadd.f32 %v116, %v117
    %v119 = vsub.f32 %v35, -0.6
    %v120 = vmul.f32 %v119, 2.5
    %v121 = vsub.f32 0.2, %v35
    %v122 = vmul.f32 %v121, 2.5
    %v123 = vmul.f32 %v120, %v60
    %v124 = vmul.f32 %v122, %v65
    %v125 = vadd.f32 %v123, %v124
    %v126 = vsub.f32 %v35, -0.2
    %v127 = vmul.f32 %v126, 2.5
    %v128 = vsub.f32 0.6, %v35
    %v129 = vmul.f32 %v128, 2.5
    %v130 = vmul.f32 %v127, %v65
    %v131 = vmul.f32 %v129, %v70
    %v132 = vadd.f32 %v130, %v131
    %v133 = vsub.f32 %v35, 0.2
    %v134 = vmul.f32 %v133, 2.5
    %v135 = vsub.f32 1.0, %v35
    %v136 = vmul.f32 %v135, 2.5
    %v137 = vmul.f32 %v134, %v70
    %v138 = vmul.f32 %v136, %v75
    %v139 = vadd.f32 %v137, %v138
    %v140 = vsub.f32 %v35, 0.6
    %v141 = vmul.f32 %v140, 2.5
    %v142 = vsub.f32 1.4, %v35
    %v143 = vmul.f32 %v142, 2.5
    %v144 = vmul.f32 %v141, %v75
    %v145 = vmul.f32 %v143, %v80
    %v146 = vadd.f32 %v144, %v145
    %v147 = vsub.f32 %v35, 1.0
    %v148 = vmul.f32 %v147, 2.5
    %v149 = vsub.f32 1.8, %v35
    %v150 = vmul.f32 %v149, 2.5
    %v151 = vmul.f32 %v148, %v80
    %v152 = vmul.f32 %v150, %v85
    %v153 = vadd.f32 %v151, %v152
    %v154 = vsub.f32 %v35, 1.4
    %v155 = vmul.f32 %v154, 2.5
    %v156 = vsub.f32 2.2, %v35
    %v157 = vmul.f32 %v156, 2.5
    %v158 = vmul.f32 %v155, %v85
    %v159 = vmul.f32 %v157, %v90
    %v160 = vadd.f32 %v158, %v159
    %v161 = vmul.f32 %v91, 1.25
    %v162 = vmul.f32 %v100, 1.25
    %v163 = vmul.f32 %v161, %v97
    %v164 = vmul.f32 %v162, %v104
    %v165 = vadd.f32 %v163, %v164
    %v166 = vmul.f32 %v98, 1.25
    %v167 = vmul.f32 %v107, 1.25
    %v168 = vmul.f32 %v166, %v104
    %v169 = vmul.f32 %v167, %v111
    %v170 = vadd.f32 %v168, %v169
    %v171 = vmul.f32 %v105, 1.25
    %v172 = vmul.f32 %v114, 1.25
    %v173 = vmul.f32 %v171, %v111
    %v174 = vmul.f32 %v172, %v118
    %v175 = vadd.f32 %v173, %v174
    %v176 = vmul.f32 %v112, 1.25
    %v177 = vmul.f32 %v121, 1.25
    %v178 = vmul.f32 %v176, %v118
    %v179 = vmul.f32 %v177, %v125
    %v180 = vadd.f32 %v178, %v179
    %v181 = vmul.f32 %v119, 1.25
    %v182 = vmul.f32 %v128, 1.25
    %v183 = vmul.f32 %v181, %v125
    %v184 = vmul.f32 %v182, %v132
    %v185 = vadd.f32 %v183, %v184
    %v186 = vmul.f32 %v126, 1.25
    %v187 = vmul.f32 %v135, 1.25
    %v188 = vmul.f32 %v186, %v132
    %v189 = vmul.f32 %v187, %v139
    %v190 = vadd.f32 %v188, %v189
    %v191 = vmul.f32 %v133, 1.25
    %v192 = vmul.f32 %v142, 1.25
    %v193 = vmul.f32 %v191, %v139
    %v194 = vmul.f32 %v192, %v146
    %v195 = vadd.f32 %v193, %v194
    %v196 = vmul.f32 %v140, 1.25
    %v197 = vmul.f32 %v149, 1.25
    %v198 = vmul.f32 %v196, %v146
    %v199 = vmul.f32 %v197, %v153
    %v200 = vadd.f32 %v198, %v199
    %v201 = vmul.f32 %v147, 1.25
    %v202 = vmul.f32 %v156, 1.25
    %v203 = vmul.f32 %v201, %v153
    %v204 = vmul.f32 %v202, %v160
    %v205 = vadd.f32 %v203, %v204
    %v206 = vmul.f32 %v91, 0.8333333
    %v207 = vmul.f32 %v107, 0.8333333
    %v208 = vmul.f32 %v206, %v165
    %v209 = vmul.f32 %v207, %v170
    %v210 = vadd.f32 %v208, %v209
    %v211 = vmul.f32 %v98, 0.8333333
    %v212 = vmul.f32 %v114, 0.8333333
    %v213 = vmul.f32 %v211, %v170
    %v214 = vmul.f32 %v212, %v175
    %v215 = vadd.f32 %v213, %v214
    %v216 = vmul.f32 %v105, 0.8333333
    %v217 = vmul.f32 %v121, 0.8333333
    %v218 = vmul.f32 %v216, %v175
    %v219 = vmul.f32 %v217, %v180
    %v220 = vadd.f32 %v218, %v219
    %v221 = vmul.f32 %v112, 0.8333333
    %v222 = vmul.f32 %v128, 0.8333333
    %v223 = vmul.f32 %v221, %v180
    %v224 = vmul.f32 %v222, %v185
    %v225 = vadd.f32 %v223, %v224
    %v226 = vmul.f32 %v119, 0.8333333
    %v227 = vmul.f32 %v135, 0.8333333
    %v228 = vmul.f32 %v226, %v185
    %v229 = vmul.f32 %v227, %v190
    %v230 = vadd.f32 %v228, %v229
    %v231 = vmul.f32 %v126, 0.8333333
    %v232 = vmul.f32 %v142, 0.8333333
    %v233 = vmul.f32 %v231, %v190
    %v234 = vmul.f32 %v232, %v195
    %v235 = vadd.f32 %v233, %v234
    %v236 = vmul.f32 %v133, 0.8333333
    %v237 = vmul.f32 %v149, 0.8333333
    %v238 = vmul.f32 %v236, %v195
    %v239 = vmul.f32 %v237, %v200
    %v240 = vadd.f32 %v238, %v239
    %v241 = vmul.f32 %v140, 0.8333333
    %v242 = vmul.f32 %v156, 0.8333333
    %v243 = vmul.f32 %v241, %v200
    %v244 = vmul.f32 %v242, %v205
    %v245 = vadd.f32 %v243, %v244
    %v246 = vsub.f32 0.0, %v35
    %v247 = vmul.f32 %v246, 1.442695
    %v248 = vpow.pop %v247
    %v249 = vadd.f32 %v248, 1.0
    %v250 = vrcp.pop %v249
    %v251 = vmul.f32 %v35, %v250
    %253 = vrot.lane.b32.xlu0 %v210, 32
    %v254 = vpop.permute.xlu0 %253
    %257 = vrot.lane.b32.xlu0 %v215, 64
    %v258 = vpop.permute.xlu0 %257
    %261 = vrot.lane.b32.xlu0 %v220, 96
    %v262 = vpop.permute.xlu0 %261
    %265 = vrot.lane.b32.xlu0 %v230, 32
    %v266 = vpop.permute.xlu0 %265
    %269 = vrot.lane.b32.xlu0 %v235, 64
    %v270 = vpop.permute.xlu0 %269
    %273 = vrot.lane.b32.xlu0 %v240, 96
    %v274 = vpop.permute.xlu0 %273
    %v276 = vsel %vm18, %v251, %v254
    %vm277 = vcmask 523264
    %v278 = vsel %vm277, %v276, %v258
    %vm279 = vcmask 785408
    %v280 = vsel %vm279, %v278, %v262
    %v281 = vsel %vm18, %v225, %v266
    %v282 = vsel %vm277, %v281, %v270
    %v283 = vsel %vm279, %v282, %v274
    %v284 = vpack.c.bf16 %v280, %v280
    %v285 = vpack.c.bf16 %v283, %v283
    %v286 = vpack.c.bf16 %v245, %v245
    %v287 = vld [vmem:[%s1] sm:$0xf]
    %v288 = vld [vmem:[%s1 + $0x4] sm:$0xf]
    %v289 = vld [vmem:[%s1 + $0x8] sm:$0xf]
    %v290 = vld [vmem:[%s1 + $0xc] sm:$0xf]
    %v291 = vld [vmem:[%s1 + $0x10] sm:$0xf]
    %v292 = vld [vmem:[%s1 + $0x14] sm:$0xf]
    %v293 = vld [vmem:[%s1 + $0x18] sm:$0xf]
    %v294 = vld [vmem:[%s1 + $0x1c] sm:$0xf]
    %v295 = vld [vmem:[%s1 + $0x20] sm:$0xf]
    %v296 = vld [vmem:[%s1 + $0x24] sm:$0xf]
    %v297 = vld [vmem:[%s1 + $0x28] sm:$0xf]
    %v298 = vld [vmem:[%s1 + $0x2c] sm:$0xf]
    %v299 = vld [vmem:[%s1 + $0x30] sm:$0xf]
    %v300 = vld [vmem:[%s1 + $0x34] sm:$0xf]
    %v301 = vld [vmem:[%s1 + $0x38] sm:$0xf]
    %v302 = vld [vmem:[%s1 + $0x3c] sm:$0xf]
    %v303 = vld [vmem:[%s1 + $0x40] sm:$0xf]
    %v304 = vld [vmem:[%s1 + $0x44] sm:$0xf]
    %v305 = vld [vmem:[%s1 + $0x48] sm:$0xf]
    %v306 = vld [vmem:[%s1 + $0x4c] sm:$0xf]
    %v307 = vld [vmem:[%s1 + $0x50] sm:$0xf]
    %v308 = vld [vmem:[%s1 + $0x54] sm:$0xf]
    %v309 = vld [vmem:[%s1 + $0x58] sm:$0xf]
    %v310 = vld [vmem:[%s1 + $0x5c] sm:$0xf]
    %v311 = vld [vmem:[%s1 + $0x60] sm:$0xf]
    %v312 = vld [vmem:[%s1 + $0x64] sm:$0xf]
    %v313 = vld [vmem:[%s1 + $0x68] sm:$0xf]
    %v314 = vld [vmem:[%s1 + $0x6c] sm:$0xf]
    %v315 = vld [vmem:[%s1 + $0x70] sm:$0xf]
    %v316 = vld [vmem:[%s1 + $0x74] sm:$0xf]
    %v317 = vld [vmem:[%s1 + $0x78] sm:$0xf]
    %v318 = vld [vmem:[%s1 + $0x7c] sm:$0xf]
    %v319 = vld [vmem:[%s1 + $0x80] sm:$0xf]
    %v320 = vld [vmem:[%s1 + $0x84] sm:$0xf]
    %v321 = vld [vmem:[%s1 + $0x88] sm:$0xf]
    %v322 = vld [vmem:[%s1 + $0x8c] sm:$0xf]
    %v359 = vunpack.c.l.b16 %v287
    %v360 = vunpack.c.l.b16 %v288
    %v361 = vunpack.c.l.b16 %v289
    %v362 = vunpack.c.l.b16 %v290
    %v363 = vunpack.c.l.b16 %v291
    %v364 = vunpack.c.l.b16 %v292
    %v365 = vunpack.c.l.b16 %v293
    %v366 = vunpack.c.l.b16 %v294
    %v367 = vunpack.c.l.b16 %v295
    %v368 = vunpack.c.l.b16 %v296
    %v369 = vunpack.c.l.b16 %v297
    %v370 = vunpack.c.l.b16 %v298
    %v371 = vunpack.c.l.b16 %v299
    %v372 = vunpack.c.l.b16 %v300
    %v373 = vunpack.c.l.b16 %v301
    %v374 = vunpack.c.l.b16 %v302
    %v375 = vunpack.c.l.b16 %v303
    %v376 = vunpack.c.l.b16 %v304
    %v377 = vunpack.c.l.b16 %v305
    %v378 = vunpack.c.l.b16 %v306
    %v379 = vunpack.c.l.b16 %v307
    %v380 = vunpack.c.l.b16 %v308
    %v381 = vunpack.c.l.b16 %v309
    %v382 = vunpack.c.l.b16 %v310
    %v383 = vunpack.c.l.b16 %v311
    %v384 = vunpack.c.l.b16 %v312
    %v385 = vunpack.c.l.b16 %v313
    %v386 = vunpack.c.l.b16 %v314
    %v387 = vunpack.c.l.b16 %v315
    %v388 = vunpack.c.l.b16 %v316
    %v389 = vunpack.c.l.b16 %v317
    %v390 = vunpack.c.l.b16 %v318
    %v391 = vunpack.c.l.b16 %v319
    %v392 = vunpack.c.l.b16 %v320
    %v393 = vunpack.c.l.b16 %v321
    %v394 = vunpack.c.l.b16 %v322
    %v395 = vpack.c.b16 %v360, %v359
    %v396 = vpack.c.b16 %v362, %v361
    %v397 = vpack.c.b16 %v364, %v363
    %v398 = vpack.c.b16 %v366, %v365
    %v399 = vpack.c.b16 %v368, %v367
    %v400 = vpack.c.b16 %v370, %v369
    %v401 = vpack.c.b16 %v372, %v371
    %v402 = vpack.c.b16 %v374, %v373
    %v403 = vpack.c.b16 %v376, %v375
    %v404 = vpack.c.b16 %v378, %v377
    %v405 = vpack.c.b16 %v380, %v379
    %v406 = vpack.c.b16 %v382, %v381
    %v407 = vpack.c.b16 %v384, %v383
    %v408 = vpack.c.b16 %v386, %v385
    %v409 = vpack.c.b16 %v388, %v387
    %v410 = vpack.c.b16 %v390, %v389
    %v411 = vpack.c.b16 %v392, %v391
    %v412 = vpack.c.b16 %v394, %v393
    %v432 = vsel %vm18, %v286, 0
    %434 = vmatpush.bf16.msra.mxu0 %v402
    %435 = vmatpush.bf16.msra.mxu0 %v401
    %436 = vmatpush.bf16.msra.mxu0 %v400
    %437 = vmatpush.bf16.msra.mxu0 %v399
    %438 = vmatpush.bf16.msra.mxu0 %v398
    %439 = vmatpush.bf16.msra.mxu0 %v397
    %440 = vmatpush.bf16.msra.mxu0 %v396
    %441 = vmatpush.bf16.msra.mxu0 %v395
    %442 = vmatmul.bf16.gmra.mxu0 %v284
    %v443 = vpop.f32.mrf.mxu0
    %v444 = vadd.f32 0.0, %v443
    %v445 = vpop.f32.mrf.mxu0
    %446 = vdwg.mxu0
    %447 = vmatpush.bf16.msra.mxu0 %v410
    %448 = vmatpush.bf16.msra.mxu0 %v409
    %449 = vmatpush.bf16.msra.mxu0 %v408
    %450 = vmatpush.bf16.msra.mxu0 %v407
    %451 = vmatpush.bf16.msra.mxu0 %v406
    %452 = vmatpush.bf16.msra.mxu0 %v405
    %453 = vmatpush.bf16.msra.mxu0 %v404
    %454 = vmatpush.bf16.msra.mxu0 %v403
    %455 = vmatmul.bf16.gmra.mxu0 %v285
    %v456 = vpop.f32.mrf.mxu0
    %v457 = vadd.f32 %v444, %v456
    %v458 = vpop.f32.mrf.mxu0
    %459 = vdwg.mxu0
    %460 = vmatpush.bf16.msra.mxu0 0
    %461 = vmatpush.bf16.msra.mxu0 0
    %462 = vmatpush.bf16.msra.mxu0 0
    %463 = vmatpush.bf16.msra.mxu0 0
    %464 = vmatpush.bf16.msra.mxu0 0
    %465 = vmatpush.bf16.msra.mxu0 0
    %466 = vmatpush.bf16.msra.mxu0 %v412
    %467 = vmatpush.bf16.msra.mxu0 %v411
    %468 = vmatmul.bf16.gmra.mxu0 %v432
    %v469 = vpop.f32.mrf.mxu0
    %v470 = vadd.f32 %v457, %v469
    %v471 = vpop.f32.mrf.mxu0
    %472 = vdwg.mxu0
    %473 = vst.msk [vmem:[#allocation2] sm:$0xff] %vm18, %v470
    %s474 = smul.u32 0, 8
    %v475 = vlaneseq
    %v476 = vshrl.u32 %v475, 7
    %v477 = vstv %s474
    %v478 = vadd.s32 %v476, %v477
    %vm479 = vcmp.lt.s32.totalorder %v478, 8
    %v480 = vsel %vm479, %v470, 0.0
    %v481 = vsel %vm18, %v480, 0.0
    %v482 = vrot.slane %v481, 4
    %v483 = vadd.f32 %v481, %v482
    %v484 = vrot.slane %v483, 2
    %v485 = vadd.f32 %v483, %v484
    %v486 = vrot.slane %v485, 1
    %v487 = vadd.f32 %v485, %v486
    %v488 = vmul.f32 %v480, %v480
    %v489 = vsel %vm18, %v488, 0.0
    %v490 = vrot.slane %v489, 4
    %v491 = vadd.f32 %v489, %v490
    %v492 = vrot.slane %v491, 2
    %v493 = vadd.f32 %v491, %v492
    %v494 = vrot.slane %v493, 1
    %v495 = vadd.f32 %v493, %v494
    %vm496 = vcmask 1040384
    %v497 = vsel %vm496, %v487, %v495
    %vm498 = vcmask 254976
    %499 = vst.msk [vmem:[#allocation4] sm:$0x3] %vm498, %v497
    // Predicated region
    $region10: #{tpu_custom_call.1} parent=1 // pred_check
      _
    $region11: #{tpu_custom_call.1} parent=1 // pred_check_branch
      %501 = sbr.rel (0) target = $region13
    $region12: #{tpu_custom_call.1} parent=1 // pred_region
      %503 = vsyncadd [#allocation3], 0
      %s505 = sshll.u32 [#allocation2], 4
      %s506 = int_to_ptr.vmem [resolvable:$true] %s505
      %s507 = sshll.u32 %s2, 4
      %s508 = int_to_ptr.hbm [resolvable:$true] %s507
      %510 = dma.vmem_to_hbm [thread:$0]  %s506, 128, %s508, [#allocation3]
    $region13: #{tpu_custom_call.1} parent=1 // pred_fallthru
      _
    // Predicated region
    $region14: #{tpu_custom_call.1} parent=1 // pred_check
      _
    $region15: #{tpu_custom_call.1} parent=1 // pred_check_branch
      %512 = sbr.rel (0) target = $region17
    $region16: #{tpu_custom_call.1} parent=1 // pred_region
      %514 = vsyncadd [#allocation5], 0
      %s516 = sshll.u32 [#allocation4], 4
      %s517 = int_to_ptr.vmem [resolvable:$true] %s516
      %s518 = sshll.u32 %s3, 4
      %s519 = int_to_ptr.hbm [resolvable:$true] %s518
      %521 = dma.vmem_to_hbm [thread:$0]  %s517, 32, %s519, [#allocation5]
    $region17: #{tpu_custom_call.1} parent=1 // pred_fallthru
      _
    // Predicated region
    $region18: #{tpu_custom_call.1} parent=1 // pred_check
      _
    $region19: #{tpu_custom_call.1} parent=1 // pred_check_branch
      %523 = sbr.rel (0) target = $region21
    $region20: #{tpu_custom_call.1} parent=1 // pred_region
      _
    $region21: #{tpu_custom_call.1} parent=1 // pred_fallthru
      _
    // Predicated region
    $region22: #{tpu_custom_call.1} parent=1 // pred_check
      _
    $region23: #{tpu_custom_call.1} parent=1 // pred_check_branch
      %525 = sbr.rel (0) target = $region25
    $region24: #{tpu_custom_call.1} parent=1 // pred_region
      %527 = dma.done [#allocation3], 128
    $region25: #{tpu_custom_call.1} parent=1 // pred_fallthru
      _
    // Predicated region
    $region26: #{tpu_custom_call.1} parent=1 // pred_check
      _
    $region27: #{tpu_custom_call.1} parent=1 // pred_check_branch
      %529 = sbr.rel (0) target = $region29
    $region28: #{tpu_custom_call.1} parent=1 // pred_region
      %531 = dma.done [#allocation5], 32
    $region29: #{tpu_custom_call.1} parent=1 // pred_fallthru
      _
    // Predicated region
    $region30: #{tpu_custom_call.1} parent=1 // pred_check
      _
    $region31: #{tpu_custom_call.1} parent=1 // pred_check_branch
      %533 = sbr.rel (0) target = $region33
    $region32: #{tpu_custom_call.1} parent=1 // pred_region
      _
    $region33: #{tpu_custom_call.1} parent=1 // pred_fallthru
      _
    %534 = vsyncpa [#allocation3], 1
    %535 = vsyncpa [#allocation5], 1

</llo_original>
